<compile_context>
chip_gen: v7x
topology: tpu7x:2x2x1
jax: 0.10.0
libtpu: 0.0.40
codegen_flags: <defaults>
</compile_context>

<pallas_src>
import math

import jax
import jax.numpy as jnp
from jax.experimental import pallas as pl
from jax.experimental.pallas import tpu as pltpu


# ------------------------------ Fused kernel ---------------------------------

def _make_fused_kernel(T, B, H, num_layers):
    """Fused LSTM-stack + fc kernel for static (T, B, H, num_layers).

    Kernel ref order:
      inputs : x_flat (T*B, D),
               [w_ih_t (D_l, 4H), w_hh_t (H, 4H), bias (1, 4H)] * num_layers,
               w_fc_t (H, O), b_fc (1, O)
      outputs: out (T, O)
    Gate column order in all packed weights/bias is [i, f, o, g].
    """
    n_in = 1 + 3 * num_layers + 2

    def kernel(*refs):
        x_ref = refs[0]
        layer_refs = refs[1:1 + 3 * num_layers]
        w_fc_ref = refs[1 + 3 * num_layers]
        b_fc_ref = refs[2 + 3 * num_layers]
        out_ref = refs[n_in]

        x_flat = x_ref[...]                                      # (T*B, D)
        h_seq = []
        for layer in range(num_layers):
            w_ih_ref = layer_refs[3 * layer + 0]
            w_hh_ref = layer_refs[3 * layer + 1]
            bias_ref = layer_refs[3 * layer + 2]

            # ---- hoisted input projection (no sequential dependency) ----
            gates_x = (jnp.dot(x_flat, w_ih_ref[...],
                               preferred_element_type=jnp.float32)
                       + bias_ref[...])                          # (T*B, 4H)

            w_hh = w_hh_ref[...]                                 # (H, 4H)

            h = jnp.zeros((B, H), jnp.float32)
            c = jnp.zeros((B, H), jnp.float32)
            h_seq = []

            # ---- serial recurrence, fully unrolled (T small & static) ----
            for t in range(T):
                # One recurrent matmul per step: (B,H) x (H,4H).
                g = gates_x[t * B:(t + 1) * B, :] + jnp.dot(
                    h, w_hh, preferred_element_type=jnp.float32)  # (B, 4H)
                # Two wide EUP ops per step: sigmoid over [i|f|o], tanh over g.
                sig = jax.nn.sigmoid(g[:, 0:3 * H])
                g_act = jnp.tanh(g[:, 3 * H:4 * H])
                i_g = sig[:, 0 * H:1 * H]
                f_g = sig[:, 1 * H:2 * H]
                o_g = sig[:, 2 * H:3 * H]
                c = f_g * c + i_g * g_act
                h = o_g * jnp.tanh(c)
                h_seq.append(h)                                  # stays in vregs

            # Next layer's matmul LHS assembled once (no per-step VMEM stores).
            x_flat = jnp.concatenate(h_seq, axis=0)              # (T*B, H)

        # ---- fc(out[:, -1]): rows out[t, B-1, :] of the last layer ----
        last = jnp.concatenate([h_seq[t][B - 1:B, :] for t in range(T)],
                               axis=0)                           # (T, H)
        out_ref[...] = (jnp.dot(last, w_fc_ref[...],
                                preferred_element_type=jnp.float32)
                        + b_fc_ref[...])

    return kernel


@jax.jit
def mlstm_basic_forward(params, x):
    """Forward pass matching mLSTM_Basic.forward.

    x: (T, B, input_size) float32  ->  (T, output_size) float32
    """
    T, B, D = x.shape
    H = params["layers"][0]["w_hh_t"].shape[0]
    O = params["w_fc_t"].shape[1]
    num_layers = len(params["layers"])

    flat_inputs = [x.reshape(T * B, D)]
    for lp in params["layers"]:
        flat_inputs += [lp["w_ih_t"], lp["w_hh_t"], lp["bias"]]
    flat_inputs += [params["w_fc_t"], params["b_fc"]]

    kernel = _make_fused_kernel(T, B, H, num_layers)
    vmem_spec = pl.BlockSpec(memory_space=pltpu.MemorySpace.VMEM)

    return pl.pallas_call(
        kernel,
        out_shape=jax.ShapeDtypeStruct((T, O), jnp.float32),
        in_specs=[vmem_spec] * len(flat_inputs),
        out_specs=vmem_spec,
    )(*flat_inputs)


# ------------------------------ Parameters ------------------------------------

def _permute_gates_ifog(w_4h_first):
    """Reorder PyTorch's [i,f,g,o] gate blocks (leading axis) to [i,f,o,g]."""
    H = w_4h_first.shape[0] // 4
    i = w_4h_first[0 * H:1 * H]
    f = w_4h_first[1 * H:2 * H]
    g = w_4h_first[2 * H:3 * H]
    o = w_4h_first[3 * H:4 * H]
    return jnp.concatenate([i, f, o, g], axis=0)


def init_params(key, input_size, hidden_size, output_size, num_layers):
    """PyTorch-style uniform(-1/sqrt(H), 1/sqrt(H)) init, pre-transposed.

    Packed gate column order is [i, f, o, g] so the kernel can use one sigmoid
    over the first 3H lanes and one tanh over the last H.
    """
    params = {"layers": []}
    stdv = 1.0 / math.sqrt(hidden_size)
    for layer in range(num_layers):
        d_in = input_size if layer == 0 else hidden_size
        key, k1, k2, k3, k4 = jax.random.split(key, 5)
        # PyTorch layout: (4H, d_in) with gate rows [i|f|g|o].
        w_ih = jax.random.uniform(k1, (4 * hidden_size, d_in), jnp.float32,
                                  -stdv, stdv)
        w_hh = jax.random.uniform(k2, (4 * hidden_size, hidden_size),
                                  jnp.float32, -stdv, stdv)
        b_ih = jax.random.uniform(k3, (4 * hidden_size,), jnp.float32,
                                  -stdv, stdv)
        b_hh = jax.random.uniform(k4, (4 * hidden_size,), jnp.float32,
                                  -stdv, stdv)
        params["layers"].append({
            "w_ih_t": _permute_gates_ifog(w_ih).T,               # (d_in, 4H)
            "w_hh_t": _permute_gates_ifog(w_hh).T,               # (H, 4H)
            "bias": _permute_gates_ifog((b_ih + b_hh)[:, None])[:, 0][None, :],
        })
    key, k5, k6 = jax.random.split(key, 3)
    w_fc = jax.random.uniform(k5, (output_size, hidden_size), jnp.float32,
                              -stdv, stdv)
    b_fc = jax.random.uniform(k6, (output_size,), jnp.float32, -stdv, stdv)
    params["w_fc_t"] = w_fc.T          # (H, O)
    params["b_fc"] = b_fc[None, :]     # (1, O)
    return params


# --------------------------- Pure-JAX reference --------------------------------

def mlstm_basic_reference(params, x):
    """Reference using the same packed [i,f,o,g] params, HIGHEST precision."""
    T, B, D = x.shape
    H = params["layers"][0]["w_hh_t"].shape[0]
    hp = jax.lax.Precision.HIGHEST
    out = x
    for lp in params["layers"]:
        def step(carry, x_t, lp=lp):
            h, c = carry
            gates = (jnp.dot(x_t, lp["w_ih_t"], precision=hp) + lp["bias"]
                     + jnp.dot(h, lp["w_hh_t"], precision=hp))
            i = jax.nn.sigmoid(gates[:, 0 * H:1 * H])
            f = jax.nn.sigmoid(gates[:, 1 * H:2 * H])
            o = jax.nn.sigmoid(gates[:, 2 * H:3 * H])
            g = jnp.tanh(gates[:, 3 * H:4 * H])
            c = f * c + i * g
            h = o * jnp.tanh(c)
            return (h, c), h
        init = (jnp.zeros((B, H), jnp.float32), jnp.zeros((B, H), jnp.float32))
        _, out = jax.lax.scan(step, init, out)
    last = out[:, -1]                                   # (T, H)
    return jnp.dot(last, params["w_fc_t"], precision=hp) + params["b_fc"]


# ----------------------------------- Main --------------------------------------

if __name__ == "__main__":
    T, B = 8, 2                 # seq_len, batch
    input_size = 4
    hidden_size = 32
    output_size = 3
    num_layers = 2

    key = jax.random.PRNGKey(0)
    key, kx = jax.random.split(key)
    x = jax.random.normal(kx, (T, B, input_size), jnp.float32)
    params = init_params(key, input_size, hidden_size, output_size, num_layers)

    y = mlstm_basic_forward(params, x)
    jax.block_until_ready(y)
    assert y.shape == (T, output_size), y.shape

    y_ref = mlstm_basic_reference(params, x)
    # TODO(synk): kernel matmuls use default MXU precision vs HIGHEST in the
    # reference; drift over 8 steps x 2 layers stays well inside 2e-2 here.
    assert jnp.allclose(y, y_ref, atol=2e-2, rtol=2e-2), (y, y_ref)

    print("KERNEL_OK")
</pallas_src>

<mosaic_0001>
module attributes {stable_mosaic.version = 11 : i64} {
  func.func @kernel(%arg0: memref<16x4xf32, #tpu.memory_space<vmem>>, %arg1: memref<4x128xf32, #tpu.memory_space<vmem>>, %arg2: memref<32x128xf32, #tpu.memory_space<vmem>>, %arg3: memref<1x128xf32, #tpu.memory_space<vmem>>, %arg4: memref<32x128xf32, #tpu.memory_space<vmem>>, %arg5: memref<32x128xf32, #tpu.memory_space<vmem>>, %arg6: memref<1x128xf32, #tpu.memory_space<vmem>>, %arg7: memref<32x3xf32, #tpu.memory_space<vmem>>, %arg8: memref<1x3xf32, #tpu.memory_space<vmem>>, %arg9: memref<8x3xf32, #tpu.memory_space<vmem>>) attributes {dimension_semantics = [], scalar_prefetch = 0 : i64, scratch_operands = 0 : i64, tpu.core_type = #tpu.core_type<tc>} {
    %c0 = arith.constant 0 : index
    %c0_0 = arith.constant 0 : index
    %0 = vector.load %arg0[%c0, %c0_0] : memref<16x4xf32, #tpu.memory_space<vmem>>, vector<16x4xf32>
    %c0_1 = arith.constant 0 : index
    %c0_2 = arith.constant 0 : index
    %1 = vector.load %arg1[%c0_1, %c0_2] : memref<4x128xf32, #tpu.memory_space<vmem>>, vector<4x128xf32>
    %cst = arith.constant dense<0.000000e+00> : vector<16x128xf32>
    %2 = tpu.matmul %0, %1, %cst {dimension_numbers = #tpu.dot_dimension_numbers<[1], [0], [0], [1], [0, 0, 1, 1], [], []>} : vector<16x4xf32>, vector<4x128xf32>, vector<16x128xf32> -> vector<16x128xf32>
    %c0_3 = arith.constant 0 : index
    %c0_4 = arith.constant 0 : index
    %3 = vector.load %arg3[%c0_3, %c0_4] : memref<1x128xf32, #tpu.memory_space<vmem>>, vector<1x128xf32>
    %4 = vector.broadcast %3 : vector<1x128xf32> to vector<16x128xf32>
    %5 = arith.addf %2, %4 : vector<16x128xf32>
    %c0_5 = arith.constant 0 : index
    %c0_6 = arith.constant 0 : index
    %6 = vector.load %arg2[%c0_5, %c0_6] : memref<32x128xf32, #tpu.memory_space<vmem>>, vector<32x128xf32>
    %cst_7 = arith.constant 0.000000e+00 : f32
    %7 = vector.broadcast %cst_7 : f32 to vector<2x32xf32>
    %cst_8 = arith.constant 0.000000e+00 : f32
    %8 = vector.broadcast %cst_8 : f32 to vector<2x32xf32>
    %9 = vector.extract_strided_slice %5 {offsets = [0, 0], sizes = [2, 128], strides = [1, 1]} : vector<16x128xf32> to vector<2x128xf32>
    %cst_9 = arith.constant dense<0.000000e+00> : vector<2x128xf32>
    %10 = tpu.matmul %7, %6, %cst_9 {dimension_numbers = #tpu.dot_dimension_numbers<[1], [0], [0], [1], [0, 0, 1, 1], [], []>} : vector<2x32xf32>, vector<32x128xf32>, vector<2x128xf32> -> vector<2x128xf32>
    %11 = arith.addf %9, %10 : vector<2x128xf32>
    %12 = vector.extract_strided_slice %11 {offsets = [0, 0], sizes = [2, 96], strides = [1, 1]} : vector<2x128xf32> to vector<2x96xf32>
    %13 = arith.negf %12 : vector<2x96xf32>
    %14 = math.exp %13 : vector<2x96xf32>
    %cst_10 = arith.constant 1.000000e+00 : f32
    %15 = vector.broadcast %cst_10 : f32 to vector<2x96xf32>
    %16 = arith.addf %15, %14 : vector<2x96xf32>
    %17 = arith.divf %15, %16 : vector<2x96xf32>
    %18 = vector.extract_strided_slice %11 {offsets = [0, 96], sizes = [2, 32], strides = [1, 1]} : vector<2x128xf32> to vector<2x32xf32>
    %19 = math.tanh %18 : vector<2x32xf32>
    %20 = vector.extract_strided_slice %17 {offsets = [0, 0], sizes = [2, 32], strides = [1, 1]} : vector<2x96xf32> to vector<2x32xf32>
    %21 = vector.extract_strided_slice %17 {offsets = [0, 32], sizes = [2, 32], strides = [1, 1]} : vector<2x96xf32> to vector<2x32xf32>
    %22 = vector.extract_strided_slice %17 {offsets = [0, 64], sizes = [2, 32], strides = [1, 1]} : vector<2x96xf32> to vector<2x32xf32>
    %23 = arith.mulf %21, %8 : vector<2x32xf32>
    %24 = arith.mulf %20, %19 : vector<2x32xf32>
    %25 = arith.addf %23, %24 : vector<2x32xf32>
    %26 = math.tanh %25 : vector<2x32xf32>
    %27 = arith.mulf %22, %26 : vector<2x32xf32>
    %28 = vector.extract_strided_slice %5 {offsets = [2, 0], sizes = [2, 128], strides = [1, 1]} : vector<16x128xf32> to vector<2x128xf32>
    %cst_11 = arith.constant dense<0.000000e+00> : vector<2x128xf32>
    %29 = tpu.matmul %27, %6, %cst_11 {dimension_numbers = #tpu.dot_dimension_numbers<[1], [0], [0], [1], [0, 0, 1, 1], [], []>} : vector<2x32xf32>, vector<32x128xf32>, vector<2x128xf32> -> vector<2x128xf32>
    %30 = arith.addf %28, %29 : vector<2x128xf32>
    %31 = vector.extract_strided_slice %30 {offsets = [0, 0], sizes = [2, 96], strides = [1, 1]} : vector<2x128xf32> to vector<2x96xf32>
    %32 = arith.negf %31 : vector<2x96xf32>
    %33 = math.exp %32 : vector<2x96xf32>
    %cst_12 = arith.constant 1.000000e+00 : f32
    %34 = vector.broadcast %cst_12 : f32 to vector<2x96xf32>
    %35 = arith.addf %34, %33 : vector<2x96xf32>
    %36 = arith.divf %34, %35 : vector<2x96xf32>
    %37 = vector.extract_strided_slice %30 {offsets = [0, 96], sizes = [2, 32], strides = [1, 1]} : vector<2x128xf32> to vector<2x32xf32>
    %38 = math.tanh %37 : vector<2x32xf32>
    %39 = vector.extract_strided_slice %36 {offsets = [0, 0], sizes = [2, 32], strides = [1, 1]} : vector<2x96xf32> to vector<2x32xf32>
    %40 = vector.extract_strided_slice %36 {offsets = [0, 32], sizes = [2, 32], strides = [1, 1]} : vector<2x96xf32> to vector<2x32xf32>
    %41 = vector.extract_strided_slice %36 {offsets = [0, 64], sizes = [2, 32], strides = [1, 1]} : vector<2x96xf32> to vector<2x32xf32>
    %42 = arith.mulf %40, %25 : vector<2x32xf32>
    %43 = arith.mulf %39, %38 : vector<2x32xf32>
    %44 = arith.addf %42, %43 : vector<2x32xf32>
    %45 = math.tanh %44 : vector<2x32xf32>
    %46 = arith.mulf %41, %45 : vector<2x32xf32>
    %47 = vector.extract_strided_slice %5 {offsets = [4, 0], sizes = [2, 128], strides = [1, 1]} : vector<16x128xf32> to vector<2x128xf32>
    %cst_13 = arith.constant dense<0.000000e+00> : vector<2x128xf32>
    %48 = tpu.matmul %46, %6, %cst_13 {dimension_numbers = #tpu.dot_dimension_numbers<[1], [0], [0], [1], [0, 0, 1, 1], [], []>} : vector<2x32xf32>, vector<32x128xf32>, vector<2x128xf32> -> vector<2x128xf32>
    %49 = arith.addf %47, %48 : vector<2x128xf32>
    %50 = vector.extract_strided_slice %49 {offsets = [0, 0], sizes = [2, 96], strides = [1, 1]} : vector<2x128xf32> to vector<2x96xf32>
    %51 = arith.negf %50 : vector<2x96xf32>
    %52 = math.exp %51 : vector<2x96xf32>
    %cst_14 = arith.constant 1.000000e+00 : f32
    %53 = vector.broadcast %cst_14 : f32 to vector<2x96xf32>
    %54 = arith.addf %53, %52 : vector<2x96xf32>
    %55 = arith.divf %53, %54 : vector<2x96xf32>
    %56 = vector.extract_strided_slice %49 {offsets = [0, 96], sizes = [2, 32], strides = [1, 1]} : vector<2x128xf32> to vector<2x32xf32>
    %57 = math.tanh %56 : vector<2x32xf32>
    %58 = vector.extract_strided_slice %55 {offsets = [0, 0], sizes = [2, 32], strides = [1, 1]} : vector<2x96xf32> to vector<2x32xf32>
    %59 = vector.extract_strided_slice %55 {offsets = [0, 32], sizes = [2, 32], strides = [1, 1]} : vector<2x96xf32> to vector<2x32xf32>
    %60 = vector.extract_strided_slice %55 {offsets = [0, 64], sizes = [2, 32], strides = [1, 1]} : vector<2x96xf32> to vector<2x32xf32>
    %61 = arith.mulf %59, %44 : vector<2x32xf32>
    %62 = arith.mulf %58, %57 : vector<2x32xf32>
    %63 = arith.addf %61, %62 : vector<2x32xf32>
    %64 = math.tanh %63 : vector<2x32xf32>
    %65 = arith.mulf %60, %64 : vector<2x32xf32>
    %66 = vector.extract_strided_slice %5 {offsets = [6, 0], sizes = [2, 128], strides = [1, 1]} : vector<16x128xf32> to vector<2x128xf32>
    %cst_15 = arith.constant dense<0.000000e+00> : vector<2x128xf32>
    %67 = tpu.matmul %65, %6, %cst_15 {dimension_numbers = #tpu.dot_dimension_numbers<[1], [0], [0], [1], [0, 0, 1, 1], [], []>} : vector<2x32xf32>, vector<32x128xf32>, vector<2x128xf32> -> vector<2x128xf32>
    %68 = arith.addf %66, %67 : vector<2x128xf32>
    %69 = vector.extract_strided_slice %68 {offsets = [0, 0], sizes = [2, 96], strides = [1, 1]} : vector<2x128xf32> to vector<2x96xf32>
    %70 = arith.negf %69 : vector<2x96xf32>
    %71 = math.exp %70 : vector<2x96xf32>
    %cst_16 = arith.constant 1.000000e+00 : f32
    %72 = vector.broadcast %cst_16 : f32 to vector<2x96xf32>
    %73 = arith.addf %72, %71 : vector<2x96xf32>
    %74 = arith.divf %72, %73 : vector<2x96xf32>
    %75 = vector.extract_strided_slice %68 {offsets = [0, 96], sizes = [2, 32], strides = [1, 1]} : vector<2x128xf32> to vector<2x32xf32>
    %76 = math.tanh %75 : vector<2x32xf32>
    %77 = vector.extract_strided_slice %74 {offsets = [0, 0], sizes = [2, 32], strides = [1, 1]} : vector<2x96xf32> to vector<2x32xf32>
    %78 = vector.extract_strided_slice %74 {offsets = [0, 32], sizes = [2, 32], strides = [1, 1]} : vector<2x96xf32> to vector<2x32xf32>
    %79 = vector.extract_strided_slice %74 {offsets = [0, 64], sizes = [2, 32], strides = [1, 1]} : vector<2x96xf32> to vector<2x32xf32>
    %80 = arith.mulf %78, %63 : vector<2x32xf32>
    %81 = arith.mulf %77, %76 : vector<2x32xf32>
    %82 = arith.addf %80, %81 : vector<2x32xf32>
    %83 = math.tanh %82 : vector<2x32xf32>
    %84 = arith.mulf %79, %83 : vector<2x32xf32>
    %85 = vector.extract_strided_slice %5 {offsets = [8, 0], sizes = [2, 128], strides = [1, 1]} : vector<16x128xf32> to vector<2x128xf32>
    %cst_17 = arith.constant dense<0.000000e+00> : vector<2x128xf32>
    %86 = tpu.matmul %84, %6, %cst_17 {dimension_numbers = #tpu.dot_dimension_numbers<[1], [0], [0], [1], [0, 0, 1, 1], [], []>} : vector<2x32xf32>, vector<32x128xf32>, vector<2x128xf32> -> vector<2x128xf32>
    %87 = arith.addf %85, %86 : vector<2x128xf32>
    %88 = vector.extract_strided_slice %87 {offsets = [0, 0], sizes = [2, 96], strides = [1, 1]} : vector<2x128xf32> to vector<2x96xf32>
    %89 = arith.negf %88 : vector<2x96xf32>
    %90 = math.exp %89 : vector<2x96xf32>
    %cst_18 = arith.constant 1.000000e+00 : f32
    %91 = vector.broadcast %cst_18 : f32 to vector<2x96xf32>
    %92 = arith.addf %91, %90 : vector<2x96xf32>
    %93 = arith.divf %91, %92 : vector<2x96xf32>
    %94 = vector.extract_strided_slice %87 {offsets = [0, 96], sizes = [2, 32], strides = [1, 1]} : vector<2x128xf32> to vector<2x32xf32>
    %95 = math.tanh %94 : vector<2x32xf32>
    %96 = vector.extract_strided_slice %93 {offsets = [0, 0], sizes = [2, 32], strides = [1, 1]} : vector<2x96xf32> to vector<2x32xf32>
    %97 = vector.extract_strided_slice %93 {offsets = [0, 32], sizes = [2, 32], strides = [1, 1]} : vector<2x96xf32> to vector<2x32xf32>
    %98 = vector.extract_strided_slice %93 {offsets = [0, 64], sizes = [2, 32], strides = [1, 1]} : vector<2x96xf32> to vector<2x32xf32>
    %99 = arith.mulf %97, %82 : vector<2x32xf32>
    %100 = arith.mulf %96, %95 : vector<2x32xf32>
    %101 = arith.addf %99, %100 : vector<2x32xf32>
    %102 = math.tanh %101 : vector<2x32xf32>
    %103 = arith.mulf %98, %102 : vector<2x32xf32>
    %104 = vector.extract_strided_slice %5 {offsets = [10, 0], sizes = [2, 128], strides = [1, 1]} : vector<16x128xf32> to vector<2x128xf32>
    %cst_19 = arith.constant dense<0.000000e+00> : vector<2x128xf32>
    %105 = tpu.matmul %103, %6, %cst_19 {dimension_numbers = #tpu.dot_dimension_numbers<[1], [0], [0], [1], [0, 0, 1, 1], [], []>} : vector<2x32xf32>, vector<32x128xf32>, vector<2x128xf32> -> vector<2x128xf32>
    %106 = arith.addf %104, %105 : vector<2x128xf32>
    %107 = vector.extract_strided_slice %106 {offsets = [0, 0], sizes = [2, 96], strides = [1, 1]} : vector<2x128xf32> to vector<2x96xf32>
    %108 = arith.negf %107 : vector<2x96xf32>
    %109 = math.exp %108 : vector<2x96xf32>
    %cst_20 = arith.constant 1.000000e+00 : f32
    %110 = vector.broadcast %cst_20 : f32 to vector<2x96xf32>
    %111 = arith.addf %110, %109 : vector<2x96xf32>
    %112 = arith.divf %110, %111 : vector<2x96xf32>
    %113 = vector.extract_strided_slice %106 {offsets = [0, 96], sizes = [2, 32], strides = [1, 1]} : vector<2x128xf32> to vector<2x32xf32>
    %114 = math.tanh %113 : vector<2x32xf32>
    %115 = vector.extract_strided_slice %112 {offsets = [0, 0], sizes = [2, 32], strides = [1, 1]} : vector<2x96xf32> to vector<2x32xf32>
    %116 = vector.extract_strided_slice %112 {offsets = [0, 32], sizes = [2, 32], strides = [1, 1]} : vector<2x96xf32> to vector<2x32xf32>
    %117 = vector.extract_strided_slice %112 {offsets = [0, 64], sizes = [2, 32], strides = [1, 1]} : vector<2x96xf32> to vector<2x32xf32>
    %118 = arith.mulf %116, %101 : vector<2x32xf32>
    %119 = arith.mulf %115, %114 : vector<2x32xf32>
    %120 = arith.addf %118, %119 : vector<2x32xf32>
    %121 = math.tanh %120 : vector<2x32xf32>
    %122 = arith.mulf %117, %121 : vector<2x32xf32>
    %123 = vector.extract_strided_slice %5 {offsets = [12, 0], sizes = [2, 128], strides = [1, 1]} : vector<16x128xf32> to vector<2x128xf32>
    %cst_21 = arith.constant dense<0.000000e+00> : vector<2x128xf32>
    %124 = tpu.matmul %122, %6, %cst_21 {dimension_numbers = #tpu.dot_dimension_numbers<[1], [0], [0], [1], [0, 0, 1, 1], [], []>} : vector<2x32xf32>, vector<32x128xf32>, vector<2x128xf32> -> vector<2x128xf32>
    %125 = arith.addf %123, %124 : vector<2x128xf32>
    %126 = vector.extract_strided_slice %125 {offsets = [0, 0], sizes = [2, 96], strides = [1, 1]} : vector<2x128xf32> to vector<2x96xf32>
    %127 = arith.negf %126 : vector<2x96xf32>
    %128 = math.exp %127 : vector<2x96xf32>
    %cst_22 = arith.constant 1.000000e+00 : f32
    %129 = vector.broadcast %cst_22 : f32 to vector<2x96xf32>
    %130 = arith.addf %129, %128 : vector<2x96xf32>
    %131 = arith.divf %129, %130 : vector<2x96xf32>
    %132 = vector.extract_strided_slice %125 {offsets = [0, 96], sizes = [2, 32], strides = [1, 1]} : vector<2x128xf32> to vector<2x32xf32>
    %133 = math.tanh %132 : vector<2x32xf32>
    %134 = vector.extract_strided_slice %131 {offsets = [0, 0], sizes = [2, 32], strides = [1, 1]} : vector<2x96xf32> to vector<2x32xf32>
    %135 = vector.extract_strided_slice %131 {offsets = [0, 32], sizes = [2, 32], strides = [1, 1]} : vector<2x96xf32> to vector<2x32xf32>
    %136 = vector.extract_strided_slice %131 {offsets = [0, 64], sizes = [2, 32], strides = [1, 1]} : vector<2x96xf32> to vector<2x32xf32>
    %137 = arith.mulf %135, %120 : vector<2x32xf32>
    %138 = arith.mulf %134, %133 : vector<2x32xf32>
    %139 = arith.addf %137, %138 : vector<2x32xf32>
    %140 = math.tanh %139 : vector<2x32xf32>
    %141 = arith.mulf %136, %140 : vector<2x32xf32>
    %142 = vector.extract_strided_slice %5 {offsets = [14, 0], sizes = [2, 128], strides = [1, 1]} : vector<16x128xf32> to vector<2x128xf32>
    %cst_23 = arith.constant dense<0.000000e+00> : vector<2x128xf32>
    %143 = tpu.matmul %141, %6, %cst_23 {dimension_numbers = #tpu.dot_dimension_numbers<[1], [0], [0], [1], [0, 0, 1, 1], [], []>} : vector<2x32xf32>, vector<32x128xf32>, vector<2x128xf32> -> vector<2x128xf32>
    %144 = arith.addf %142, %143 : vector<2x128xf32>
    %145 = vector.extract_strided_slice %144 {offsets = [0, 0], sizes = [2, 96], strides = [1, 1]} : vector<2x128xf32> to vector<2x96xf32>
    %146 = arith.negf %145 : vector<2x96xf32>
    %147 = math.exp %146 : vector<2x96xf32>
    %cst_24 = arith.constant 1.000000e+00 : f32
    %148 = vector.broadcast %cst_24 : f32 to vector<2x96xf32>
    %149 = arith.addf %148, %147 : vector<2x96xf32>
    %150 = arith.divf %148, %149 : vector<2x96xf32>
    %151 = vector.extract_strided_slice %144 {offsets = [0, 96], sizes = [2, 32], strides = [1, 1]} : vector<2x128xf32> to vector<2x32xf32>
    %152 = math.tanh %151 : vector<2x32xf32>
    %153 = vector.extract_strided_slice %150 {offsets = [0, 0], sizes = [2, 32], strides = [1, 1]} : vector<2x96xf32> to vector<2x32xf32>
    %154 = vector.extract_strided_slice %150 {offsets = [0, 32], sizes = [2, 32], strides = [1, 1]} : vector<2x96xf32> to vector<2x32xf32>
    %155 = vector.extract_strided_slice %150 {offsets = [0, 64], sizes = [2, 32], strides = [1, 1]} : vector<2x96xf32> to vector<2x32xf32>
    %156 = arith.mulf %154, %139 : vector<2x32xf32>
    %157 = arith.mulf %153, %152 : vector<2x32xf32>
    %158 = arith.addf %156, %157 : vector<2x32xf32>
    %159 = math.tanh %158 : vector<2x32xf32>
    %160 = arith.mulf %155, %159 : vector<2x32xf32>
    %161 = tpu.concatenate %27, %46, %65, %84, %103, %122, %141, %160 in 0 : vector<2x32xf32>, vector<2x32xf32>, vector<2x32xf32>, vector<2x32xf32>, vector<2x32xf32>, vector<2x32xf32>, vector<2x32xf32>, vector<2x32xf32> -> vector<16x32xf32>
    %c0_25 = arith.constant 0 : index
    %c0_26 = arith.constant 0 : index
    %162 = vector.load %arg4[%c0_25, %c0_26] : memref<32x128xf32, #tpu.memory_space<vmem>>, vector<32x128xf32>
    %cst_27 = arith.constant dense<0.000000e+00> : vector<16x128xf32>
    %163 = tpu.matmul %161, %162, %cst_27 {dimension_numbers = #tpu.dot_dimension_numbers<[1], [0], [0], [1], [0, 0, 1, 1], [], []>} : vector<16x32xf32>, vector<32x128xf32>, vector<16x128xf32> -> vector<16x128xf32>
    %c0_28 = arith.constant 0 : index
    %c0_29 = arith.constant 0 : index
    %164 = vector.load %arg6[%c0_28, %c0_29] : memref<1x128xf32, #tpu.memory_space<vmem>>, vector<1x128xf32>
    %165 = vector.broadcast %164 : vector<1x128xf32> to vector<16x128xf32>
    %166 = arith.addf %163, %165 : vector<16x128xf32>
    %c0_30 = arith.constant 0 : index
    %c0_31 = arith.constant 0 : index
    %167 = vector.load %arg5[%c0_30, %c0_31] : memref<32x128xf32, #tpu.memory_space<vmem>>, vector<32x128xf32>
    %cst_32 = arith.constant 0.000000e+00 : f32
    %168 = vector.broadcast %cst_32 : f32 to vector<2x32xf32>
    %cst_33 = arith.constant 0.000000e+00 : f32
    %169 = vector.broadcast %cst_33 : f32 to vector<2x32xf32>
    %170 = vector.extract_strided_slice %166 {offsets = [0, 0], sizes = [2, 128], strides = [1, 1]} : vector<16x128xf32> to vector<2x128xf32>
    %cst_34 = arith.constant dense<0.000000e+00> : vector<2x128xf32>
    %171 = tpu.matmul %168, %167, %cst_34 {dimension_numbers = #tpu.dot_dimension_numbers<[1], [0], [0], [1], [0, 0, 1, 1], [], []>} : vector<2x32xf32>, vector<32x128xf32>, vector<2x128xf32> -> vector<2x128xf32>
    %172 = arith.addf %170, %171 : vector<2x128xf32>
    %173 = vector.extract_strided_slice %172 {offsets = [0, 0], sizes = [2, 96], strides = [1, 1]} : vector<2x128xf32> to vector<2x96xf32>
    %174 = arith.negf %173 : vector<2x96xf32>
    %175 = math.exp %174 : vector<2x96xf32>
    %cst_35 = arith.constant 1.000000e+00 : f32
    %176 = vector.broadcast %cst_35 : f32 to vector<2x96xf32>
    %177 = arith.addf %176, %175 : vector<2x96xf32>
    %178 = arith.divf %176, %177 : vector<2x96xf32>
    %179 = vector.extract_strided_slice %172 {offsets = [0, 96], sizes = [2, 32], strides = [1, 1]} : vector<2x128xf32> to vector<2x32xf32>
    %180 = math.tanh %179 : vector<2x32xf32>
    %181 = vector.extract_strided_slice %178 {offsets = [0, 0], sizes = [2, 32], strides = [1, 1]} : vector<2x96xf32> to vector<2x32xf32>
    %182 = vector.extract_strided_slice %178 {offsets = [0, 32], sizes = [2, 32], strides = [1, 1]} : vector<2x96xf32> to vector<2x32xf32>
    %183 = vector.extract_strided_slice %178 {offsets = [0, 64], sizes = [2, 32], strides = [1, 1]} : vector<2x96xf32> to vector<2x32xf32>
    %184 = arith.mulf %182, %169 : vector<2x32xf32>
    %185 = arith.mulf %181, %180 : vector<2x32xf32>
    %186 = arith.addf %184, %185 : vector<2x32xf32>
    %187 = math.tanh %186 : vector<2x32xf32>
    %188 = arith.mulf %183, %187 : vector<2x32xf32>
    %189 = vector.extract_strided_slice %166 {offsets = [2, 0], sizes = [2, 128], strides = [1, 1]} : vector<16x128xf32> to vector<2x128xf32>
    %cst_36 = arith.constant dense<0.000000e+00> : vector<2x128xf32>
    %190 = tpu.matmul %188, %167, %cst_36 {dimension_numbers = #tpu.dot_dimension_numbers<[1], [0], [0], [1], [0, 0, 1, 1], [], []>} : vector<2x32xf32>, vector<32x128xf32>, vector<2x128xf32> -> vector<2x128xf32>
    %191 = arith.addf %189, %190 : vector<2x128xf32>
    %192 = vector.extract_strided_slice %191 {offsets = [0, 0], sizes = [2, 96], strides = [1, 1]} : vector<2x128xf32> to vector<2x96xf32>
    %193 = arith.negf %192 : vector<2x96xf32>
    %194 = math.exp %193 : vector<2x96xf32>
    %cst_37 = arith.constant 1.000000e+00 : f32
    %195 = vector.broadcast %cst_37 : f32 to vector<2x96xf32>
    %196 = arith.addf %195, %194 : vector<2x96xf32>
    %197 = arith.divf %195, %196 : vector<2x96xf32>
    %198 = vector.extract_strided_slice %191 {offsets = [0, 96], sizes = [2, 32], strides = [1, 1]} : vector<2x128xf32> to vector<2x32xf32>
    %199 = math.tanh %198 : vector<2x32xf32>
    %200 = vector.extract_strided_slice %197 {offsets = [0, 0], sizes = [2, 32], strides = [1, 1]} : vector<2x96xf32> to vector<2x32xf32>
    %201 = vector.extract_strided_slice %197 {offsets = [0, 32], sizes = [2, 32], strides = [1, 1]} : vector<2x96xf32> to vector<2x32xf32>
    %202 = vector.extract_strided_slice %197 {offsets = [0, 64], sizes = [2, 32], strides = [1, 1]} : vector<2x96xf32> to vector<2x32xf32>
    %203 = arith.mulf %201, %186 : vector<2x32xf32>
    %204 = arith.mulf %200, %199 : vector<2x32xf32>
    %205 = arith.addf %203, %204 : vector<2x32xf32>
    %206 = math.tanh %205 : vector<2x32xf32>
    %207 = arith.mulf %202, %206 : vector<2x32xf32>
    %208 = vector.extract_strided_slice %166 {offsets = [4, 0], sizes = [2, 128], strides = [1, 1]} : vector<16x128xf32> to vector<2x128xf32>
    %cst_38 = arith.constant dense<0.000000e+00> : vector<2x128xf32>
    %209 = tpu.matmul %207, %167, %cst_38 {dimension_numbers = #tpu.dot_dimension_numbers<[1], [0], [0], [1], [0, 0, 1, 1], [], []>} : vector<2x32xf32>, vector<32x128xf32>, vector<2x128xf32> -> vector<2x128xf32>
    %210 = arith.addf %208, %209 : vector<2x128xf32>
    %211 = vector.extract_strided_slice %210 {offsets = [0, 0], sizes = [2, 96], strides = [1, 1]} : vector<2x128xf32> to vector<2x96xf32>
    %212 = arith.negf %211 : vector<2x96xf32>
    %213 = math.exp %212 : vector<2x96xf32>
    %cst_39 = arith.constant 1.000000e+00 : f32
    %214 = vector.broadcast %cst_39 : f32 to vector<2x96xf32>
    %215 = arith.addf %214, %213 : vector<2x96xf32>
    %216 = arith.divf %214, %215 : vector<2x96xf32>
    %217 = vector.extract_strided_slice %210 {offsets = [0, 96], sizes = [2, 32], strides = [1, 1]} : vector<2x128xf32> to vector<2x32xf32>
    %218 = math.tanh %217 : vector<2x32xf32>
    %219 = vector.extract_strided_slice %216 {offsets = [0, 0], sizes = [2, 32], strides = [1, 1]} : vector<2x96xf32> to vector<2x32xf32>
    %220 = vector.extract_strided_slice %216 {offsets = [0, 32], sizes = [2, 32], strides = [1, 1]} : vector<2x96xf32> to vector<2x32xf32>
    %221 = vector.extract_strided_slice %216 {offsets = [0, 64], sizes = [2, 32], strides = [1, 1]} : vector<2x96xf32> to vector<2x32xf32>
    %222 = arith.mulf %220, %205 : vector<2x32xf32>
    %223 = arith.mulf %219, %218 : vector<2x32xf32>
    %224 = arith.addf %222, %223 : vector<2x32xf32>
    %225 = math.tanh %224 : vector<2x32xf32>
    %226 = arith.mulf %221, %225 : vector<2x32xf32>
    %227 = vector.extract_strided_slice %166 {offsets = [6, 0], sizes = [2, 128], strides = [1, 1]} : vector<16x128xf32> to vector<2x128xf32>
    %cst_40 = arith.constant dense<0.000000e+00> : vector<2x128xf32>
    %228 = tpu.matmul %226, %167, %cst_40 {dimension_numbers = #tpu.dot_dimension_numbers<[1], [0], [0], [1], [0, 0, 1, 1], [], []>} : vector<2x32xf32>, vector<32x128xf32>, vector<2x128xf32> -> vector<2x128xf32>
    %229 = arith.addf %227, %228 : vector<2x128xf32>
    %230 = vector.extract_strided_slice %229 {offsets = [0, 0], sizes = [2, 96], strides = [1, 1]} : vector<2x128xf32> to vector<2x96xf32>
    %231 = arith.negf %230 : vector<2x96xf32>
    %232 = math.exp %231 : vector<2x96xf32>
    %cst_41 = arith.constant 1.000000e+00 : f32
    %233 = vector.broadcast %cst_41 : f32 to vector<2x96xf32>
    %234 = arith.addf %233, %232 : vector<2x96xf32>
    %235 = arith.divf %233, %234 : vector<2x96xf32>
    %236 = vector.extract_strided_slice %229 {offsets = [0, 96], sizes = [2, 32], strides = [1, 1]} : vector<2x128xf32> to vector<2x32xf32>
    %237 = math.tanh %236 : vector<2x32xf32>
    %238 = vector.extract_strided_slice %235 {offsets = [0, 0], sizes = [2, 32], strides = [1, 1]} : vector<2x96xf32> to vector<2x32xf32>
    %239 = vector.extract_strided_slice %235 {offsets = [0, 32], sizes = [2, 32], strides = [1, 1]} : vector<2x96xf32> to vector<2x32xf32>
    %240 = vector.extract_strided_slice %235 {offsets = [0, 64], sizes = [2, 32], strides = [1, 1]} : vector<2x96xf32> to vector<2x32xf32>
    %241 = arith.mulf %239, %224 : vector<2x32xf32>
    %242 = arith.mulf %238, %237 : vector<2x32xf32>
    %243 = arith.addf %241, %242 : vector<2x32xf32>
    %244 = math.tanh %243 : vector<2x32xf32>
    %245 = arith.mulf %240, %244 : vector<2x32xf32>
    %246 = vector.extract_strided_slice %166 {offsets = [8, 0], sizes = [2, 128], strides = [1, 1]} : vector<16x128xf32> to vector<2x128xf32>
    %cst_42 = arith.constant dense<0.000000e+00> : vector<2x128xf32>
    %247 = tpu.matmul %245, %167, %cst_42 {dimension_numbers = #tpu.dot_dimension_numbers<[1], [0], [0], [1], [0, 0, 1, 1], [], []>} : vector<2x32xf32>, vector<32x128xf32>, vector<2x128xf32> -> vector<2x128xf32>
    %248 = arith.addf %246, %247 : vector<2x128xf32>
    %249 = vector.extract_strided_slice %248 {offsets = [0, 0], sizes = [2, 96], strides = [1, 1]} : vector<2x128xf32> to vector<2x96xf32>
    %250 = arith.negf %249 : vector<2x96xf32>
    %251 = math.exp %250 : vector<2x96xf32>
    %cst_43 = arith.constant 1.000000e+00 : f32
    %252 = vector.broadcast %cst_43 : f32 to vector<2x96xf32>
    %253 = arith.addf %252, %251 : vector<2x96xf32>
    %254 = arith.divf %252, %253 : vector<2x96xf32>
    %255 = vector.extract_strided_slice %248 {offsets = [0, 96], sizes = [2, 32], strides = [1, 1]} : vector<2x128xf32> to vector<2x32xf32>
    %256 = math.tanh %255 : vector<2x32xf32>
    %257 = vector.extract_strided_slice %254 {offsets = [0, 0], sizes = [2, 32], strides = [1, 1]} : vector<2x96xf32> to vector<2x32xf32>
    %258 = vector.extract_strided_slice %254 {offsets = [0, 32], sizes = [2, 32], strides = [1, 1]} : vector<2x96xf32> to vector<2x32xf32>
    %259 = vector.extract_strided_slice %254 {offsets = [0, 64], sizes = [2, 32], strides = [1, 1]} : vector<2x96xf32> to vector<2x32xf32>
    %260 = arith.mulf %258, %243 : vector<2x32xf32>
    %261 = arith.mulf %257, %256 : vector<2x32xf32>
    %262 = arith.addf %260, %261 : vector<2x32xf32>
    %263 = math.tanh %262 : vector<2x32xf32>
    %264 = arith.mulf %259, %263 : vector<2x32xf32>
    %265 = vector.extract_strided_slice %166 {offsets = [10, 0], sizes = [2, 128], strides = [1, 1]} : vector<16x128xf32> to vector<2x128xf32>
    %cst_44 = arith.constant dense<0.000000e+00> : vector<2x128xf32>
    %266 = tpu.matmul %264, %167, %cst_44 {dimension_numbers = #tpu.dot_dimension_numbers<[1], [0], [0], [1], [0, 0, 1, 1], [], []>} : vector<2x32xf32>, vector<32x128xf32>, vector<2x128xf32> -> vector<2x128xf32>
    %267 = arith.addf %265, %266 : vector<2x128xf32>
    %268 = vector.extract_strided_slice %267 {offsets = [0, 0], sizes = [2, 96], strides = [1, 1]} : vector<2x128xf32> to vector<2x96xf32>
    %269 = arith.negf %268 : vector<2x96xf32>
    %270 = math.exp %269 : vector<2x96xf32>
    %cst_45 = arith.constant 1.000000e+00 : f32
    %271 = vector.broadcast %cst_45 : f32 to vector<2x96xf32>
    %272 = arith.addf %271, %270 : vector<2x96xf32>
    %273 = arith.divf %271, %272 : vector<2x96xf32>
    %274 = vector.extract_strided_slice %267 {offsets = [0, 96], sizes = [2, 32], strides = [1, 1]} : vector<2x128xf32> to vector<2x32xf32>
    %275 = math.tanh %274 : vector<2x32xf32>
    %276 = vector.extract_strided_slice %273 {offsets = [0, 0], sizes = [2, 32], strides = [1, 1]} : vector<2x96xf32> to vector<2x32xf32>
    %277 = vector.extract_strided_slice %273 {offsets = [0, 32], sizes = [2, 32], strides = [1, 1]} : vector<2x96xf32> to vector<2x32xf32>
    %278 = vector.extract_strided_slice %273 {offsets = [0, 64], sizes = [2, 32], strides = [1, 1]} : vector<2x96xf32> to vector<2x32xf32>
    %279 = arith.mulf %277, %262 : vector<2x32xf32>
    %280 = arith.mulf %276, %275 : vector<2x32xf32>
    %281 = arith.addf %279, %280 : vector<2x32xf32>
    %282 = math.tanh %281 : vector<2x32xf32>
    %283 = arith.mulf %278, %282 : vector<2x32xf32>
    %284 = vector.extract_strided_slice %166 {offsets = [12, 0], sizes = [2, 128], strides = [1, 1]} : vector<16x128xf32> to vector<2x128xf32>
    %cst_46 = arith.constant dense<0.000000e+00> : vector<2x128xf32>
    %285 = tpu.matmul %283, %167, %cst_46 {dimension_numbers = #tpu.dot_dimension_numbers<[1], [0], [0], [1], [0, 0, 1, 1], [], []>} : vector<2x32xf32>, vector<32x128xf32>, vector<2x128xf32> -> vector<2x128xf32>
    %286 = arith.addf %284, %285 : vector<2x128xf32>
    %287 = vector.extract_strided_slice %286 {offsets = [0, 0], sizes = [2, 96], strides = [1, 1]} : vector<2x128xf32> to vector<2x96xf32>
    %288 = arith.negf %287 : vector<2x96xf32>
    %289 = math.exp %288 : vector<2x96xf32>
    %cst_47 = arith.constant 1.000000e+00 : f32
    %290 = vector.broadcast %cst_47 : f32 to vector<2x96xf32>
    %291 = arith.addf %290, %289 : vector<2x96xf32>
    %292 = arith.divf %290, %291 : vector<2x96xf32>
    %293 = vector.extract_strided_slice %286 {offsets = [0, 96], sizes = [2, 32], strides = [1, 1]} : vector<2x128xf32> to vector<2x32xf32>
    %294 = math.tanh %293 : vector<2x32xf32>
    %295 = vector.extract_strided_slice %292 {offsets = [0, 0], sizes = [2, 32], strides = [1, 1]} : vector<2x96xf32> to vector<2x32xf32>
    %296 = vector.extract_strided_slice %292 {offsets = [0, 32], sizes = [2, 32], strides = [1, 1]} : vector<2x96xf32> to vector<2x32xf32>
    %297 = vector.extract_strided_slice %292 {offsets = [0, 64], sizes = [2, 32], strides = [1, 1]} : vector<2x96xf32> to vector<2x32xf32>
    %298 = arith.mulf %296, %281 : vector<2x32xf32>
    %299 = arith.mulf %295, %294 : vector<2x32xf32>
    %300 = arith.addf %298, %299 : vector<2x32xf32>
    %301 = math.tanh %300 : vector<2x32xf32>
    %302 = arith.mulf %297, %301 : vector<2x32xf32>
    %303 = vector.extract_strided_slice %166 {offsets = [14, 0], sizes = [2, 128], strides = [1, 1]} : vector<16x128xf32> to vector<2x128xf32>
    %cst_48 = arith.constant dense<0.000000e+00> : vector<2x128xf32>
    %304 = tpu.matmul %302, %167, %cst_48 {dimension_numbers = #tpu.dot_dimension_numbers<[1], [0], [0], [1], [0, 0, 1, 1], [], []>} : vector<2x32xf32>, vector<32x128xf32>, vector<2x128xf32> -> vector<2x128xf32>
    %305 = arith.addf %303, %304 : vector<2x128xf32>
    %306 = vector.extract_strided_slice %305 {offsets = [0, 0], sizes = [2, 96], strides = [1, 1]} : vector<2x128xf32> to vector<2x96xf32>
    %307 = arith.negf %306 : vector<2x96xf32>
    %308 = math.exp %307 : vector<2x96xf32>
    %cst_49 = arith.constant 1.000000e+00 : f32
    %309 = vector.broadcast %cst_49 : f32 to vector<2x96xf32>
    %310 = arith.addf %309, %308 : vector<2x96xf32>
    %311 = arith.divf %309, %310 : vector<2x96xf32>
    %312 = vector.extract_strided_slice %305 {offsets = [0, 96], sizes = [2, 32], strides = [1, 1]} : vector<2x128xf32> to vector<2x32xf32>
    %313 = math.tanh %312 : vector<2x32xf32>
    %314 = vector.extract_strided_slice %311 {offsets = [0, 0], sizes = [2, 32], strides = [1, 1]} : vector<2x96xf32> to vector<2x32xf32>
    %315 = vector.extract_strided_slice %311 {offsets = [0, 32], sizes = [2, 32], strides = [1, 1]} : vector<2x96xf32> to vector<2x32xf32>
    %316 = vector.extract_strided_slice %311 {offsets = [0, 64], sizes = [2, 32], strides = [1, 1]} : vector<2x96xf32> to vector<2x32xf32>
    %317 = arith.mulf %315, %300 : vector<2x32xf32>
    %318 = arith.mulf %314, %313 : vector<2x32xf32>
    %319 = arith.addf %317, %318 : vector<2x32xf32>
    %320 = math.tanh %319 : vector<2x32xf32>
    %321 = arith.mulf %316, %320 : vector<2x32xf32>
    %322 = vector.extract_strided_slice %188 {offsets = [1, 0], sizes = [1, 32], strides = [1, 1]} : vector<2x32xf32> to vector<1x32xf32>
    %323 = vector.extract_strided_slice %207 {offsets = [1, 0], sizes = [1, 32], strides = [1, 1]} : vector<2x32xf32> to vector<1x32xf32>
    %324 = vector.extract_strided_slice %226 {offsets = [1, 0], sizes = [1, 32], strides = [1, 1]} : vector<2x32xf32> to vector<1x32xf32>
    %325 = vector.extract_strided_slice %245 {offsets = [1, 0], sizes = [1, 32], strides = [1, 1]} : vector<2x32xf32> to vector<1x32xf32>
    %326 = vector.extract_strided_slice %264 {offsets = [1, 0], sizes = [1, 32], strides = [1, 1]} : vector<2x32xf32> to vector<1x32xf32>
    %327 = vector.extract_strided_slice %283 {offsets = [1, 0], sizes = [1, 32], strides = [1, 1]} : vector<2x32xf32> to vector<1x32xf32>
    %328 = vector.extract_strided_slice %302 {offsets = [1, 0], sizes = [1, 32], strides = [1, 1]} : vector<2x32xf32> to vector<1x32xf32>
    %329 = vector.extract_strided_slice %321 {offsets = [1, 0], sizes = [1, 32], strides = [1, 1]} : vector<2x32xf32> to vector<1x32xf32>
    %330 = tpu.concatenate %322, %323, %324, %325, %326, %327, %328, %329 in 0 : vector<1x32xf32>, vector<1x32xf32>, vector<1x32xf32>, vector<1x32xf32>, vector<1x32xf32>, vector<1x32xf32>, vector<1x32xf32>, vector<1x32xf32> -> vector<8x32xf32>
    %c0_50 = arith.constant 0 : index
    %c0_51 = arith.constant 0 : index
    %331 = vector.load %arg7[%c0_50, %c0_51] : memref<32x3xf32, #tpu.memory_space<vmem>>, vector<32x3xf32>
    %cst_52 = arith.constant dense<0.000000e+00> : vector<8x3xf32>
    %332 = tpu.matmul %330, %331, %cst_52 {dimension_numbers = #tpu.dot_dimension_numbers<[1], [0], [0], [1], [0, 0, 1, 1], [], []>} : vector<8x32xf32>, vector<32x3xf32>, vector<8x3xf32> -> vector<8x3xf32>
    %c0_53 = arith.constant 0 : index
    %c0_54 = arith.constant 0 : index
    %333 = vector.load %arg8[%c0_53, %c0_54] : memref<1x3xf32, #tpu.memory_space<vmem>>, vector<1x3xf32>
    %334 = vector.broadcast %333 : vector<1x3xf32> to vector<8x3xf32>
    %335 = arith.addf %332, %334 : vector<8x3xf32>
    %c0_55 = arith.constant 0 : index
    %c0_56 = arith.constant 0 : index
    %336 = vector.load %arg9[%c0_55, %c0_56] : memref<8x3xf32, #tpu.memory_space<vmem>>, vector<8x3xf32>
    tpu.vector_store %arg9[%c0_55, %c0_56], %335 {strides = array<i32>} : memref<8x3xf32, #tpu.memory_space<vmem>>, vector<8x3xf32>,
    return
  }
}

</mosaic_0001>

<llo_original>
// kernel: mlstm_basic_forward.1
$region0: #{mlstm_basic_forward.1}
  #allocation0 [shape = 'u32[]', space=smem, size = 0x4, offset = 0x4, fixed_abs, tag = 'smem constant byte address 0x4 - core index']
  #allocation1 [shape = 'u32[144,128]{1,0:T(1,128)}', space=vmem, size = 0x12000, scoped, tag = 'internal scratch']
  %s0 = inlined_call_operand.vmem [shape: f32[16,4], index: 0, kind: input, shape index: {}]
  %s1 = inlined_call_operand.hbm [shape: f32[4,128], index: 1, kind: input, shape index: {}]
  %s2 = inlined_call_operand.vmem [shape: f32[32,128], index: 2, kind: input, shape index: {}]
  %s3 = inlined_call_operand.vmem [shape: f32[1,128], index: 3, kind: input, shape index: {}]
  %s4 = inlined_call_operand.vmem [shape: f32[32,128], index: 4, kind: input, shape index: {}]
  %s5 = inlined_call_operand.hbm [shape: f32[32,128], index: 5, kind: input, shape index: {}]
  %s6 = inlined_call_operand.vmem [shape: f32[1,128], index: 6, kind: input, shape index: {}]
  %s7 = inlined_call_operand.vmem [shape: f32[32,3], index: 7, kind: input, shape index: {}]
  %s8 = inlined_call_operand.hbm [shape: f32[1,3], index: 8, kind: input, shape index: {}]
  %s9 = inlined_call_operand.vmem [shape: f32[8,3], index: 9, kind: output, shape index: {}]
  %s10 = sld [smem:[#allocation0]]
  $region58: #{mlstm_basic_forward.1} parent=0
    _
  %s12 = ssub.s32 1, %s10
  %s13 = scalar_select 0, %s12, %s10
  $region1: #{mlstm_basic_forward.1} parent=0
    #allocation2 [shape = 'u8[2048]{0}', space=vmem, size = 0x800, scoped, tag = 'input window, operand 1, single buffered']
    #allocation3 [shape = 's32[1]{0}', space=sflag, size = 0x4, scoped, tag = 'scoped memory for mlstm_basic_forward.1']
    #allocation4 [shape = 'u8[16384]{0}', space=vmem, size = 0x4000, scoped, tag = 'input window, operand 5, single buffered']
    #allocation5 [shape = 's32[1]{0}', space=sflag, size = 0x4, scoped, tag = 'scoped memory for mlstm_basic_forward.1']
    #allocation6 [shape = 'u8[512]{0}', space=vmem, size = 0x400, scoped, tag = 'input window, operand 8, single buffered']
    %14 = vsyncpa [#allocation3], 0
    %15 = vsyncpa [#allocation5], 0
    // Predicated region
    $region2: #{mlstm_basic_forward.1} parent=1 // pred_check
      _
    $region3: #{mlstm_basic_forward.1} parent=1 // pred_check_branch
      %17 = sbr.rel (0) target = $region5
    $region4: #{mlstm_basic_forward.1} parent=1 // pred_region
      _
    $region5: #{mlstm_basic_forward.1} parent=1 // pred_fallthru
      _
    // Predicated region
    $region6: #{mlstm_basic_forward.1} parent=1 // pred_check
      _
    $region7: #{mlstm_basic_forward.1} parent=1 // pred_check_branch
      %19 = sbr.rel (0) target = $region9
    $region8: #{mlstm_basic_forward.1} parent=1 // pred_region
      %s21 = ssub.s32 64, 64
      %22 = vsyncadd [#allocation3], %s21
      %s24 = sshll.u32 [#allocation2], 4
      %s25 = int_to_ptr.vmem [resolvable:$true] %s24
      %27 = dma.hbm_to_vmem [thread:$0]  %s1, 64, %s25, [#allocation3]
    $region9: #{mlstm_basic_forward.1} parent=1 // pred_fallthru
      _
    // Predicated region
    $region10: #{mlstm_basic_forward.1} parent=1 // pred_check
      _
    $region11: #{mlstm_basic_forward.1} parent=1 // pred_check_branch
      %29 = sbr.rel (0) target = $region13
    $region12: #{mlstm_basic_forward.1} parent=1 // pred_region
      _
    $region13: #{mlstm_basic_forward.1} parent=1 // pred_fallthru
      _
    // Predicated region
    $region14: #{mlstm_basic_forward.1} parent=1 // pred_check
      _
    $region15: #{mlstm_basic_forward.1} parent=1 // pred_check_branch
      %31 = sbr.rel (0) target = $region17
    $region16: #{mlstm_basic_forward.1} parent=1 // pred_region
      _
    $region17: #{mlstm_basic_forward.1} parent=1 // pred_fallthru
      _
    // Predicated region
    $region18: #{mlstm_basic_forward.1} parent=1 // pred_check
      _
    $region19: #{mlstm_basic_forward.1} parent=1 // pred_check_branch
      %33 = sbr.rel (0) target = $region21
    $region20: #{mlstm_basic_forward.1} parent=1 // pred_region
      _
    $region21: #{mlstm_basic_forward.1} parent=1 // pred_fallthru
      _
    // Predicated region
    $region22: #{mlstm_basic_forward.1} parent=1 // pred_check
      _
    $region23: #{mlstm_basic_forward.1} parent=1 // pred_check_branch
      %35 = sbr.rel (0) target = $region25
    $region24: #{mlstm_basic_forward.1} parent=1 // pred_region
      %s37 = ssub.s32 512, 512
      %38 = vsyncadd [#allocation5], %s37
      %s39 = sshll.u32 [#allocation4], 4
      %s40 = int_to_ptr.vmem [resolvable:$true] %s39
      %45 = dma.hbm_to_vmem [thread:$0]  %s5, 512, %s40, [#allocation5], 128, 128, 8
    $region25: #{mlstm_basic_forward.1} parent=1 // pred_fallthru
      _
    // Predicated region
    $region26: #{mlstm_basic_forward.1} parent=1 // pred_check
      _
    $region27: #{mlstm_basic_forward.1} parent=1 // pred_check_branch
      %47 = sbr.rel (0) target = $region29
    $region28: #{mlstm_basic_forward.1} parent=1 // pred_region
      _
    $region29: #{mlstm_basic_forward.1} parent=1 // pred_fallthru
      _
    // Predicated region
    $region30: #{mlstm_basic_forward.1} parent=1 // pred_check
      _
    $region31: #{mlstm_basic_forward.1} parent=1 // pred_check_branch
      %49 = sbr.rel (0) target = $region33
    $region32: #{mlstm_basic_forward.1} parent=1 // pred_region
      _
    $region33: #{mlstm_basic_forward.1} parent=1 // pred_fallthru
      _
    // Predicated region
    $region34: #{mlstm_basic_forward.1} parent=1 // pred_check
      _
    $region35: #{mlstm_basic_forward.1} parent=1 // pred_check_branch
      %51 = sbr.rel (0) target = $region37
    $region36: #{mlstm_basic_forward.1} parent=1 // pred_region
      %s53 = ssub.s32 16, 16
      %54 = vsyncadd [#allocation5], %s53
      %s56 = sshll.u32 [#allocation6], 4
      %s57 = int_to_ptr.vmem [resolvable:$true] %s56
      %59 = dma.hbm_to_vmem [thread:$0]  %s8, 16, %s57, [#allocation5]
    $region37: #{mlstm_basic_forward.1} parent=1 // pred_fallthru
      _
    // Predicated region
    $region38: #{mlstm_basic_forward.1} parent=1 // pred_check
      _
    $region39: #{mlstm_basic_forward.1} parent=1 // pred_check_branch
      %61 = sbr.rel (0) target = $region41
    $region40: #{mlstm_basic_forward.1} parent=1 // pred_region
      %62 = dma.done [#allocation3], 64
    $region41: #{mlstm_basic_forward.1} parent=1 // pred_fallthru
      _
    // Predicated region
    $region42: #{mlstm_basic_forward.1} parent=1 // pred_check
      _
    $region43: #{mlstm_basic_forward.1} parent=1 // pred_check_branch
      %64 = sbr.rel (0) target = $region45
    $region44: #{mlstm_basic_forward.1} parent=1 // pred_region
      %65 = dma.done [#allocation5], 512
    $region45: #{mlstm_basic_forward.1} parent=1 // pred_fallthru
      _
    // Predicated region
    $region46: #{mlstm_basic_forward.1} parent=1 // pred_check
      _
    $region47: #{mlstm_basic_forward.1} parent=1 // pred_check_branch
      %67 = sbr.rel (0) target = $region49
    $region48: #{mlstm_basic_forward.1} parent=1 // pred_region
      %68 = dma.done [#allocation5], 16
    $region49: #{mlstm_basic_forward.1} parent=1 // pred_fallthru
      _
    %v69 = vld [vmem:[%s0] sm:$0xff]
    %v70 = vld [vmem:[%s0 + $0x8] sm:$0xff]
    %v71 = vld [vmem:[#allocation2] sm:$0xf]
    %v72 = vld [vmem:[%s3] sm:$0x1]
    %v74 = vlaneseq
    %v75 = vshrl.u32 %v74, 7
    %v76 = vsub.s32 0, %v75
    %v77 = vrot.slane %v72, %v76
    %vm79 = vcmask 31744
    %v81 = vsel %vm79, %v69, 0
    %v84 = vsel %vm79, %v70, 0
    %vm86 = vcmask 1043456
    %v88 = vsel %vm86, %v71, 0
    %90 = vmatprep.subr.mxu0 0.0
    %91 = vmatpush1.msra.mxu0 %v88
    %92 = vmatprep.subr.mxu0 0.0
    %93 = vmatpush1.msra.mxu0 0.0
    %94 = vmatprep.subr.mxu0 0.0
    %95 = vmatpush1.msra.mxu0 0.0
    %96 = vmatprep.subr.mxu0 0.0
    %97 = vmatpush1.msra.mxu0 0.0
    %98 = vmatprep.subr.mxu0 0.0
    %99 = vmatpush1.msra.mxu0 0.0
    %100 = vmatprep.subr.mxu0 0.0
    %101 = vmatpush1.msra.mxu0 0.0
    %102 = vmatprep.subr.mxu0 0.0
    %103 = vmatpush1.msra.mxu0 0.0
    %104 = vmatprep.subr.mxu0 0.0
    %105 = vmatpush1.msra.mxu0 0.0
    %106 = vmatprep.subr.mxu0 0.0
    %107 = vmatpush1.msra.mxu0 0.0
    %108 = vmatprep.subr.mxu0 0.0
    %109 = vmatpush1.msra.mxu0 0.0
    %110 = vmatprep.subr.mxu0 0.0
    %111 = vmatpush1.msra.mxu0 0.0
    %112 = vmatprep.subr.mxu0 0.0
    %113 = vmatpush1.msra.mxu0 0.0
    %114 = vmatprep.subr.mxu0 0.0
    %115 = vmatpush1.msra.mxu0 0.0
    %116 = vmatprep.subr.mxu0 0.0
    %117 = vmatpush1.msra.mxu0 0.0
    %118 = vmatprep.subr.mxu0 0.0
    %119 = vmatpush1.msra.mxu0 0.0
    %120 = vmatprep.subr.mxu0 0.0
    %121 = vmatpush1.msra.mxu0 0.0
    %122 = vmatprep.subr.mxu0 0.0
    %123 = vmatpush1.msra.mxu0 0.0
    %124 = vmatprep.subr.mxu0 0.0
    %125 = vmatpush1.msra.mxu0 0.0
    %126 = vmatprep.subr.mxu0 0.0
    %127 = vmatpush1.msra.mxu0 0.0
    %128 = vmatprep.subr.mxu0 0.0
    %129 = vmatpush1.msra.mxu0 0.0
    %130 = vmatprep.subr.mxu0 0.0
    %131 = vmatpush1.msra.mxu0 0.0
    %132 = vmatprep.subr.mxu0 0.0
    %133 = vmatpush1.msra.mxu0 0.0
    %134 = vmatprep.subr.mxu0 0.0
    %135 = vmatpush1.msra.mxu0 0.0
    %136 = vmatprep.subr.mxu0 0.0
    %137 = vmatpush1.msra.mxu0 0.0
    %138 = vmatprep.subr.mxu0 0.0
    %139 = vmatpush1.msra.mxu0 0.0
    %140 = vmatprep.subr.mxu0 0.0
    %141 = vmatpush1.msra.mxu0 0.0
    %142 = vmatprep.subr.mxu0 0.0
    %143 = vmatpush1.msra.mxu0 0.0
    %144 = vmatprep.subr.mxu0 0.0
    %145 = vmatpush1.msra.mxu0 0.0
    %146 = vmatprep.subr.mxu0 0.0
    %147 = vmatpush1.msra.mxu0 0.0
    %148 = vmatprep.subr.mxu0 0.0
    %149 = vmatpush1.msra.mxu0 0.0
    %150 = vmatprep.subr.mxu0 0.0
    %151 = vmatpush1.msra.mxu0 0.0
    %152 = vmatprep.subr.mxu0 0.0
    %153 = vmatpush1.msra.mxu0 0.0
    %154 = vmatprep.mubr.f32.mxu0 0.0
    %155 = vmatmul.mubr.f32.gmra.mrb[0].mxu0 %v81
    %v156 = vpop.f32.mrb[0].mxu0
    %v157 = vadd.f32 %v77, %v156
    %v158 = vpop.f32.mrb[0].mxu0
    %159 = vmatprep.mubr.f32.mxu0 0.0
    %160 = vmatmul.mubr.f32.gmra.mrb[0].mxu0 %v84
    %v161 = vpop.f32.mrb[0].mxu0
    %v162 = vadd.f32 %v77, %v161
    %v163 = vpop.f32.mrb[0].mxu0
    %164 = vdwg.mxu0
    %v165 = vld [vmem:[%s2] sm:$0xff]
    %v166 = vld [vmem:[%s2 + $0x8] sm:$0xff]
    %v167 = vld [vmem:[%s2 + $0x10] sm:$0xff]
    %v168 = vld [vmem:[%s2 + $0x18] sm:$0xff]
    %vm169 = vcmask 261120
    %v171 = vsel %vm169, 0.0, 0
    %173 = vmatprep.subr.mxu0 0.0
    %174 = vmatpush1.msra.mxu0 %v165
    %175 = vmatprep.subr.mxu0 0.0
    %176 = vmatpush1.msra.mxu0 %v166
    %177 = vmatprep.subr.mxu0 0.0
    %178 = vmatpush1.msra.mxu0 %v167
    %179 = vmatprep.subr.mxu0 0.0
    %180 = vmatpush1.msra.mxu0 %v168
    %181 = vmatprep.subr.mxu0 0.0
    %182 = vmatpush1.msra.mxu0 0.0
    %183 = vmatprep.subr.mxu0 0.0
    %184 = vmatpush1.msra.mxu0 0.0
    %185 = vmatprep.subr.mxu0 0.0
    %186 = vmatpush1.msra.mxu0 0.0
    %187 = vmatprep.subr.mxu0 0.0
    %188 = vmatpush1.msra.mxu0 0.0
    %189 = vmatprep.subr.mxu0 0.0
    %190 = vmatpush1.msra.mxu0 0.0
    %191 = vmatprep.subr.mxu0 0.0
    %192 = vmatpush1.msra.mxu0 0.0
    %193 = vmatprep.subr.mxu0 0.0
    %194 = vmatpush1.msra.mxu0 0.0
    %195 = vmatprep.subr.mxu0 0.0
    %196 = vmatpush1.msra.mxu0 0.0
    %197 = vmatprep.subr.mxu0 0.0
    %198 = vmatpush1.msra.mxu0 0.0
    %199 = vmatprep.subr.mxu0 0.0
    %200 = vmatpush1.msra.mxu0 0.0
    %201 = vmatprep.subr.mxu0 0.0
    %202 = vmatpush1.msra.mxu0 0.0
    %203 = vmatprep.subr.mxu0 0.0
    %204 = vmatpush1.msra.mxu0 0.0
    %205 = vmatprep.subr.mxu0 0.0
    %206 = vmatpush1.msra.mxu0 0.0
    %207 = vmatprep.subr.mxu0 0.0
    %208 = vmatpush1.msra.mxu0 0.0
    %209 = vmatprep.subr.mxu0 0.0
    %210 = vmatpush1.msra.mxu0 0.0
    %211 = vmatprep.subr.mxu0 0.0
    %212 = vmatpush1.msra.mxu0 0.0
    %213 = vmatprep.subr.mxu0 0.0
    %214 = vmatpush1.msra.mxu0 0.0
    %215 = vmatprep.subr.mxu0 0.0
    %216 = vmatpush1.msra.mxu0 0.0
    %217 = vmatprep.subr.mxu0 0.0
    %218 = vmatpush1.msra.mxu0 0.0
    %219 = vmatprep.subr.mxu0 0.0
    %220 = vmatpush1.msra.mxu0 0.0
    %221 = vmatprep.subr.mxu0 0.0
    %222 = vmatpush1.msra.mxu0 0.0
    %223 = vmatprep.subr.mxu0 0.0
    %224 = vmatpush1.msra.mxu0 0.0
    %225 = vmatprep.subr.mxu0 0.0
    %226 = vmatpush1.msra.mxu0 0.0
    %227 = vmatprep.subr.mxu0 0.0
    %228 = vmatpush1.msra.mxu0 0.0
    %229 = vmatprep.subr.mxu0 0.0
    %230 = vmatpush1.msra.mxu0 0.0
    %231 = vmatprep.subr.mxu0 0.0
    %232 = vmatpush1.msra.mxu0 0.0
    %233 = vmatprep.subr.mxu0 0.0
    %234 = vmatpush1.msra.mxu0 0.0
    %235 = vmatprep.subr.mxu0 0.0
    %236 = vmatpush1.msra.mxu0 0.0
    %237 = vmatprep.mubr.f32.mxu0 0.0
    %238 = vmatmul.mubr.f32.gmra.mrb[0].mxu0 %v171
    %v239 = vpop.f32.mrb[0].mxu0
    %v240 = vadd.f32 0.0, %v239
    %v241 = vpop.f32.mrb[0].mxu0
    %242 = vdwg.mxu0
    %v243 = vadd.f32 %v157, %v240
    %v244 = vxor.u32 %v243, 2147483648
    %v245 = vmul.f32 %v244, 1.442695
    %v246 = vpow.pop %v245
    %v247 = vadd.f32 %v246, 1.0
    %v248 = vrcp.pop %v247
    %v249 = vmul.f32 1.0, %v248
    %v250 = vtanh.pop %v243
    %v251 = vmul.f32 %v249, 0.0
    %253 = vrot.lane.b32.xlu0 %v250, 32
    %v254 = vpop.permute.xlu0 %253
    %v256 = vmul.f32 %v249, %v254
    %258 = vrot.lane.b32.xlu0 %v256, 32
    %v259 = vpop.permute.xlu0 %258
    %v261 = vadd.f32 %v251, %v259
    %v262 = vtanh.pop %v261
    %264 = vrot.lane.b32.xlu0 %v262, 32
    %v265 = vpop.permute.xlu0 %264
    %v267 = vmul.f32 %v249, %v265
    %269 = vrot.lane.b32.xlu0 %v267, 64
    %v270 = vpop.permute.xlu0 %269
    %v271 = vsel %vm169, %v270, 0
    %273 = vmatprep.subr.mxu0 0.0
    %274 = vmatpush1.msra.mxu0 %v165
    %275 = vmatprep.subr.mxu0 0.0
    %276 = vmatpush1.msra.mxu0 %v166
    %277 = vmatprep.subr.mxu0 0.0
    %278 = vmatpush1.msra.mxu0 %v167
    %279 = vmatprep.subr.mxu0 0.0
    %280 = vmatpush1.msra.mxu0 %v168
    %281 = vmatprep.subr.mxu0 0.0
    %282 = vmatpush1.msra.mxu0 0.0
    %283 = vmatprep.subr.mxu0 0.0
    %284 = vmatpush1.msra.mxu0 0.0
    %285 = vmatprep.subr.mxu0 0.0
    %286 = vmatpush1.msra.mxu0 0.0
    %287 = vmatprep.subr.mxu0 0.0
    %288 = vmatpush1.msra.mxu0 0.0
    %289 = vmatprep.subr.mxu0 0.0
    %290 = vmatpush1.msra.mxu0 0.0
    %291 = vmatprep.subr.mxu0 0.0
    %292 = vmatpush1.msra.mxu0 0.0
    %293 = vmatprep.subr.mxu0 0.0
    %294 = vmatpush1.msra.mxu0 0.0
    %295 = vmatprep.subr.mxu0 0.0
    %296 = vmatpush1.msra.mxu0 0.0
    %297 = vmatprep.subr.mxu0 0.0
    %298 = vmatpush1.msra.mxu0 0.0
    %299 = vmatprep.subr.mxu0 0.0
    %300 = vmatpush1.msra.mxu0 0.0
    %301 = vmatprep.subr.mxu0 0.0
    %302 = vmatpush1.msra.mxu0 0.0
    %303 = vmatprep.subr.mxu0 0.0
    %304 = vmatpush1.msra.mxu0 0.0
    %305 = vmatprep.subr.mxu0 0.0
    %306 = vmatpush1.msra.mxu0 0.0
    %307 = vmatprep.subr.mxu0 0.0
    %308 = vmatpush1.msra.mxu0 0.0
    %309 = vmatprep.subr.mxu0 0.0
    %310 = vmatpush1.msra.mxu0 0.0
    %311 = vmatprep.subr.mxu0 0.0
    %312 = vmatpush1.msra.mxu0 0.0
    %313 = vmatprep.subr.mxu0 0.0
    %314 = vmatpush1.msra.mxu0 0.0
    %315 = vmatprep.subr.mxu0 0.0
    %316 = vmatpush1.msra.mxu0 0.0
    %317 = vmatprep.subr.mxu0 0.0
    %318 = vmatpush1.msra.mxu0 0.0
    %319 = vmatprep.subr.mxu0 0.0
    %320 = vmatpush1.msra.mxu0 0.0
    %321 = vmatprep.subr.mxu0 0.0
    %322 = vmatpush1.msra.mxu0 0.0
    %323 = vmatprep.subr.mxu0 0.0
    %324 = vmatpush1.msra.mxu0 0.0
    %325 = vmatprep.subr.mxu0 0.0
    %326 = vmatpush1.msra.mxu0 0.0
    %327 = vmatprep.subr.mxu0 0.0
    %328 = vmatpush1.msra.mxu0 0.0
    %329 = vmatprep.subr.mxu0 0.0
    %330 = vmatpush1.msra.mxu0 0.0
    %331 = vmatprep.subr.mxu0 0.0
    %332 = vmatpush1.msra.mxu0 0.0
    %333 = vmatprep.subr.mxu0 0.0
    %334 = vmatpush1.msra.mxu0 0.0
    %335 = vmatprep.subr.mxu0 0.0
    %336 = vmatpush1.msra.mxu0 0.0
    %337 = vmatprep.mubr.f32.mxu0 0.0
    %338 = vmatmul.mubr.f32.gmra.mrb[0].mxu0 %v271
    %v339 = vpop.f32.mrb[0].mxu0
    %v340 = vadd.f32 0.0, %v339
    %v341 = vpop.f32.mrb[0].mxu0
    %342 = vdwg.mxu0
    %v344 = vrot.slane %v340, 6
    %v346 = vadd.f32 %v157, %v344
    %v347 = vxor.u32 %v346, 2147483648
    %v348 = vmul.f32 %v347, 1.442695
    %v349 = vpow.pop %v348
    %v350 = vadd.f32 %v349, 1.0
    %v351 = vrcp.pop %v350
    %v352 = vmul.f32 1.0, %v351
    %v353 = vtanh.pop %v346
    %v355 = vrot.slane %v261, 6
    %v357 = vmul.f32 %v352, %v355
    %359 = vrot.lane.b32.xlu0 %v353, 32
    %v360 = vpop.permute.xlu0 %359
    %v362 = vmul.f32 %v352, %v360
    %364 = vrot.lane.b32.xlu0 %v362, 32
    %v365 = vpop.permute.xlu0 %364
    %v367 = vadd.f32 %v357, %v365
    %v368 = vtanh.pop %v367
    %370 = vrot.lane.b32.xlu0 %v368, 32
    %v371 = vpop.permute.xlu0 %370
    %v373 = vmul.f32 %v352, %v371
    %v375 = vrot.slane %v373, 2
    %376 = vrot.lane.b32.xlu0 %v375, 64
    %v377 = vpop.permute.xlu0 %376
    %v378 = vsel %vm169, %v377, 0
    %380 = vmatprep.subr.mxu0 0.0
    %381 = vmatpush1.msra.mxu0 %v165
    %382 = vmatprep.subr.mxu0 0.0
    %383 = vmatpush1.msra.mxu0 %v166
    %384 = vmatprep.subr.mxu0 0.0
    %385 = vmatpush1.msra.mxu0 %v167
    %386 = vmatprep.subr.mxu0 0.0
    %387 = vmatpush1.msra.mxu0 %v168
    %388 = vmatprep.subr.mxu0 0.0
    %389 = vmatpush1.msra.mxu0 0.0
    %390 = vmatprep.subr.mxu0 0.0
    %391 = vmatpush1.msra.mxu0 0.0
    %392 = vmatprep.subr.mxu0 0.0
    %393 = vmatpush1.msra.mxu0 0.0
    %394 = vmatprep.subr.mxu0 0.0
    %395 = vmatpush1.msra.mxu0 0.0
    %396 = vmatprep.subr.mxu0 0.0
    %397 = vmatpush1.msra.mxu0 0.0
    %398 = vmatprep.subr.mxu0 0.0
    %399 = vmatpush1.msra.mxu0 0.0
    %400 = vmatprep.subr.mxu0 0.0
    %401 = vmatpush1.msra.mxu0 0.0
    %402 = vmatprep.subr.mxu0 0.0
    %403 = vmatpush1.msra.mxu0 0.0
    %404 = vmatprep.subr.mxu0 0.0
    %405 = vmatpush1.msra.mxu0 0.0
    %406 = vmatprep.subr.mxu0 0.0
    %407 = vmatpush1.msra.mxu0 0.0
    %408 = vmatprep.subr.mxu0 0.0
    %409 = vmatpush1.msra.mxu0 0.0
    %410 = vmatprep.subr.mxu0 0.0
    %411 = vmatpush1.msra.mxu0 0.0
    %412 = vmatprep.subr.mxu0 0.0
    %413 = vmatpush1.msra.mxu0 0.0
    %414 = vmatprep.subr.mxu0 0.0
    %415 = vmatpush1.msra.mxu0 0.0
    %416 = vmatprep.subr.mxu0 0.0
    %417 = vmatpush1.msra.mxu0 0.0
    %418 = vmatprep.subr.mxu0 0.0
    %419 = vmatpush1.msra.mxu0 0.0
    %420 = vmatprep.subr.mxu0 0.0
    %421 = vmatpush1.msra.mxu0 0.0
    %422 = vmatprep.subr.mxu0 0.0
    %423 = vmatpush1.msra.mxu0 0.0
    %424 = vmatprep.subr.mxu0 0.0
    %425 = vmatpush1.msra.mxu0 0.0
    %426 = vmatprep.subr.mxu0 0.0
    %427 = vmatpush1.msra.mxu0 0.0
    %428 = vmatprep.subr.mxu0 0.0
    %429 = vmatpush1.msra.mxu0 0.0
    %430 = vmatprep.subr.mxu0 0.0
    %431 = vmatpush1.msra.mxu0 0.0
    %432 = vmatprep.subr.mxu0 0.0
    %433 = vmatpush1.msra.mxu0 0.0
    %434 = vmatprep.subr.mxu0 0.0
    %435 = vmatpush1.msra.mxu0 0.0
    %436 = vmatprep.subr.mxu0 0.0
    %437 = vmatpush1.msra.mxu0 0.0
    %438 = vmatprep.subr.mxu0 0.0
    %439 = vmatpush1.msra.mxu0 0.0
    %440 = vmatprep.subr.mxu0 0.0
    %441 = vmatpush1.msra.mxu0 0.0
    %442 = vmatprep.subr.mxu0 0.0
    %443 = vmatpush1.msra.mxu0 0.0
    %444 = vmatprep.mubr.f32.mxu0 0.0
    %445 = vmatmul.mubr.f32.gmra.mrb[0].mxu0 %v378
    %v446 = vpop.f32.mrb[0].mxu0
    %v447 = vadd.f32 0.0, %v446
    %v448 = vpop.f32.mrb[0].mxu0
    %449 = vdwg.mxu0
    %v451 = vrot.slane %v447, 4
    %v453 = vadd.f32 %v157, %v451
    %v454 = vxor.u32 %v453, 2147483648
    %v455 = vmul.f32 %v454, 1.442695
    %v456 = vpow.pop %v455
    %v457 = vadd.f32 %v456, 1.0
    %v458 = vrcp.pop %v457
    %v459 = vmul.f32 1.0, %v458
    %v460 = vtanh.pop %v453
    %v462 = vrot.slane %v367, 6
    %v464 = vmul.f32 %v459, %v462
    %466 = vrot.lane.b32.xlu0 %v460, 32
    %v467 = vpop.permute.xlu0 %466
    %v469 = vmul.f32 %v459, %v467
    %471 = vrot.lane.b32.xlu0 %v469, 32
    %v472 = vpop.permute.xlu0 %471
    %v474 = vadd.f32 %v464, %v472
    %v475 = vtanh.pop %v474
    %477 = vrot.lane.b32.xlu0 %v475, 32
    %v478 = vpop.permute.xlu0 %477
    %v480 = vmul.f32 %v459, %v478
    %v482 = vrot.slane %v480, 4
    %483 = vrot.lane.b32.xlu0 %v482, 64
    %v484 = vpop.permute.xlu0 %483
    %v485 = vsel %vm169, %v484, 0
    %487 = vmatprep.subr.mxu0 0.0
    %488 = vmatpush1.msra.mxu0 %v165
    %489 = vmatprep.subr.mxu0 0.0
    %490 = vmatpush1.msra.mxu0 %v166
    %491 = vmatprep.subr.mxu0 0.0
    %492 = vmatpush1.msra.mxu0 %v167
    %493 = vmatprep.subr.mxu0 0.0
    %494 = vmatpush1.msra.mxu0 %v168
    %495 = vmatprep.subr.mxu0 0.0
    %496 = vmatpush1.msra.mxu0 0.0
    %497 = vmatprep.subr.mxu0 0.0
    %498 = vmatpush1.msra.mxu0 0.0
    %499 = vmatprep.subr.mxu0 0.0
    %500 = vmatpush1.msra.mxu0 0.0
    %501 = vmatprep.subr.mxu0 0.0
    %502 = vmatpush1.msra.mxu0 0.0
    %503 = vmatprep.subr.mxu0 0.0
    %504 = vmatpush1.msra.mxu0 0.0
    %505 = vmatprep.subr.mxu0 0.0
    %506 = vmatpush1.msra.mxu0 0.0
    %507 = vmatprep.subr.mxu0 0.0
    %508 = vmatpush1.msra.mxu0 0.0
    %509 = vmatprep.subr.mxu0 0.0
    %510 = vmatpush1.msra.mxu0 0.0
    %511 = vmatprep.subr.mxu0 0.0
    %512 = vmatpush1.msra.mxu0 0.0
    %513 = vmatprep.subr.mxu0 0.0
    %514 = vmatpush1.msra.mxu0 0.0
    %515 = vmatprep.subr.mxu0 0.0
    %516 = vmatpush1.msra.mxu0 0.0
    %517 = vmatprep.subr.mxu0 0.0
    %518 = vmatpush1.msra.mxu0 0.0
    %519 = vmatprep.subr.mxu0 0.0
    %520 = vmatpush1.msra.mxu0 0.0
    %521 = vmatprep.subr.mxu0 0.0
    %522 = vmatpush1.msra.mxu0 0.0
    %523 = vmatprep.subr.mxu0 0.0
    %524 = vmatpush1.msra.mxu0 0.0
    %525 = vmatprep.subr.mxu0 0.0
    %526 = vmatpush1.msra.mxu0 0.0
    %527 = vmatprep.subr.mxu0 0.0
    %528 = vmatpush1.msra.mxu0 0.0
    %529 = vmatprep.subr.mxu0 0.0
    %530 = vmatpush1.msra.mxu0 0.0
    %531 = vmatprep.subr.mxu0 0.0
    %532 = vmatpush1.msra.mxu0 0.0
    %533 = vmatprep.subr.mxu0 0.0
    %534 = vmatpush1.msra.mxu0 0.0
    %535 = vmatprep.subr.mxu0 0.0
    %536 = vmatpush1.msra.mxu0 0.0
    %537 = vmatprep.subr.mxu0 0.0
    %538 = vmatpush1.msra.mxu0 0.0
    %539 = vmatprep.subr.mxu0 0.0
    %540 = vmatpush1.msra.mxu0 0.0
    %541 = vmatprep.subr.mxu0 0.0
    %542 = vmatpush1.msra.mxu0 0.0
    %543 = vmatprep.subr.mxu0 0.0
    %544 = vmatpush1.msra.mxu0 0.0
    %545 = vmatprep.subr.mxu0 0.0
    %546 = vmatpush1.msra.mxu0 0.0
    %547 = vmatprep.subr.mxu0 0.0
    %548 = vmatpush1.msra.mxu0 0.0
    %549 = vmatprep.subr.mxu0 0.0
    %550 = vmatpush1.msra.mxu0 0.0
    %551 = vmatprep.mubr.f32.mxu0 0.0
    %552 = vmatmul.mubr.f32.gmra.mrb[0].mxu0 %v485
    %v553 = vpop.f32.mrb[0].mxu0
    %v554 = vadd.f32 0.0, %v553
    %v555 = vpop.f32.mrb[0].mxu0
    %556 = vdwg.mxu0
    %v558 = vrot.slane %v554, 2
    %v560 = vadd.f32 %v157, %v558
    %v561 = vxor.u32 %v560, 2147483648
    %v562 = vmul.f32 %v561, 1.442695
    %v563 = vpow.pop %v562
    %v564 = vadd.f32 %v563, 1.0
    %v565 = vrcp.pop %v564
    %v566 = vmul.f32 1.0, %v565
    %v567 = vtanh.pop %v560
    %v569 = vrot.slane %v474, 6
    %v571 = vmul.f32 %v566, %v569
    %573 = vrot.lane.b32.xlu0 %v567, 32
    %v574 = vpop.permute.xlu0 %573
    %v576 = vmul.f32 %v566, %v574
    %578 = vrot.lane.b32.xlu0 %v576, 32
    %v579 = vpop.permute.xlu0 %578
    %v581 = vadd.f32 %v571, %v579
    %v582 = vtanh.pop %v581
    %584 = vrot.lane.b32.xlu0 %v582, 32
    %v585 = vpop.permute.xlu0 %584
    %v587 = vmul.f32 %v566, %v585
    %v589 = vrot.slane %v587, 6
    %590 = vrot.lane.b32.xlu0 %v589, 64
    %v591 = vpop.permute.xlu0 %590
    %v592 = vsel %vm169, %v591, 0
    %594 = vmatprep.subr.mxu0 0.0
    %595 = vmatpush1.msra.mxu0 %v165
    %596 = vmatprep.subr.mxu0 0.0
    %597 = vmatpush1.msra.mxu0 %v166
    %598 = vmatprep.subr.mxu0 0.0
    %599 = vmatpush1.msra.mxu0 %v167
    %600 = vmatprep.subr.mxu0 0.0
    %601 = vmatpush1.msra.mxu0 %v168
    %602 = vmatprep.subr.mxu0 0.0
    %603 = vmatpush1.msra.mxu0 0.0
    %604 = vmatprep.subr.mxu0 0.0
    %605 = vmatpush1.msra.mxu0 0.0
    %606 = vmatprep.subr.mxu0 0.0
    %607 = vmatpush1.msra.mxu0 0.0
    %608 = vmatprep.subr.mxu0 0.0
    %609 = vmatpush1.msra.mxu0 0.0
    %610 = vmatprep.subr.mxu0 0.0
    %611 = vmatpush1.msra.mxu0 0.0
    %612 = vmatprep.subr.mxu0 0.0
    %613 = vmatpush1.msra.mxu0 0.0
    %614 = vmatprep.subr.mxu0 0.0
    %615 = vmatpush1.msra.mxu0 0.0
    %616 = vmatprep.subr.mxu0 0.0
    %617 = vmatpush1.msra.mxu0 0.0
    %618 = vmatprep.subr.mxu0 0.0
    %619 = vmatpush1.msra.mxu0 0.0
    %620 = vmatprep.subr.mxu0 0.0
    %621 = vmatpush1.msra.mxu0 0.0
    %622 = vmatprep.subr.mxu0 0.0
    %623 = vmatpush1.msra.mxu0 0.0
    %624 = vmatprep.subr.mxu0 0.0
    %625 = vmatpush1.msra.mxu0 0.0
    %626 = vmatprep.subr.mxu0 0.0
    %627 = vmatpush1.msra.mxu0 0.0
    %628 = vmatprep.subr.mxu0 0.0
    %629 = vmatpush1.msra.mxu0 0.0
    %630 = vmatprep.subr.mxu0 0.0
    %631 = vmatpush1.msra.mxu0 0.0
    %632 = vmatprep.subr.mxu0 0.0
    %633 = vmatpush1.msra.mxu0 0.0
    %634 = vmatprep.subr.mxu0 0.0
    %635 = vmatpush1.msra.mxu0 0.0
    %636 = vmatprep.subr.mxu0 0.0
    %637 = vmatpush1.msra.mxu0 0.0
    %638 = vmatprep.subr.mxu0 0.0
    %639 = vmatpush1.msra.mxu0 0.0
    %640 = vmatprep.subr.mxu0 0.0
    %641 = vmatpush1.msra.mxu0 0.0
    %642 = vmatprep.subr.mxu0 0.0
    %643 = vmatpush1.msra.mxu0 0.0
    %644 = vmatprep.subr.mxu0 0.0
    %645 = vmatpush1.msra.mxu0 0.0
    %646 = vmatprep.subr.mxu0 0.0
    %647 = vmatpush1.msra.mxu0 0.0
    %648 = vmatprep.subr.mxu0 0.0
    %649 = vmatpush1.msra.mxu0 0.0
    %650 = vmatprep.subr.mxu0 0.0
    %651 = vmatpush1.msra.mxu0 0.0
    %652 = vmatprep.subr.mxu0 0.0
    %653 = vmatpush1.msra.mxu0 0.0
    %654 = vmatprep.subr.mxu0 0.0
    %655 = vmatpush1.msra.mxu0 0.0
    %656 = vmatprep.subr.mxu0 0.0
    %657 = vmatpush1.msra.mxu0 0.0
    %658 = vmatprep.mubr.f32.mxu0 0.0
    %659 = vmatmul.mubr.f32.gmra.mrb[0].mxu0 %v592
    %v660 = vpop.f32.mrb[0].mxu0
    %v661 = vadd.f32 0.0, %v660
    %v662 = vpop.f32.mrb[0].mxu0
    %663 = vdwg.mxu0
    %v664 = vadd.f32 %v162, %v661
    %v665 = vxor.u32 %v664, 2147483648
    %v666 = vmul.f32 %v665, 1.442695
    %v667 = vpow.pop %v666
    %v668 = vadd.f32 %v667, 1.0
    %v669 = vrcp.pop %v668
    %v670 = vmul.f32 1.0, %v669
    %v671 = vtanh.pop %v664
    %v673 = vrot.slane %v581, 6
    %v675 = vmul.f32 %v670, %v673
    %677 = vrot.lane.b32.xlu0 %v671, 32
    %v678 = vpop.permute.xlu0 %677
    %v680 = vmul.f32 %v670, %v678
    %682 = vrot.lane.b32.xlu0 %v680, 32
    %v683 = vpop.permute.xlu0 %682
    %v685 = vadd.f32 %v675, %v683
    %v686 = vtanh.pop %v685
    %688 = vrot.lane.b32.xlu0 %v686, 32
    %v689 = vpop.permute.xlu0 %688
    %v691 = vmul.f32 %v670, %v689
    %693 = vrot.lane.b32.xlu0 %v691, 64
    %v694 = vpop.permute.xlu0 %693
    %v695 = vsel %vm169, %v694, 0
    %697 = vmatprep.subr.mxu0 0.0
    %698 = vmatpush1.msra.mxu0 %v165
    %699 = vmatprep.subr.mxu0 0.0
    %700 = vmatpush1.msra.mxu0 %v166
    %701 = vmatprep.subr.mxu0 0.0
    %702 = vmatpush1.msra.mxu0 %v167
    %703 = vmatprep.subr.mxu0 0.0
    %704 = vmatpush1.msra.mxu0 %v168
    %705 = vmatprep.subr.mxu0 0.0
    %706 = vmatpush1.msra.mxu0 0.0
    %707 = vmatprep.subr.mxu0 0.0
    %708 = vmatpush1.msra.mxu0 0.0
    %709 = vmatprep.subr.mxu0 0.0
    %710 = vmatpush1.msra.mxu0 0.0
    %711 = vmatprep.subr.mxu0 0.0
    %712 = vmatpush1.msra.mxu0 0.0
    %713 = vmatprep.subr.mxu0 0.0
    %714 = vmatpush1.msra.mxu0 0.0
    %715 = vmatprep.subr.mxu0 0.0
    %716 = vmatpush1.msra.mxu0 0.0
    %717 = vmatprep.subr.mxu0 0.0
    %718 = vmatpush1.msra.mxu0 0.0
    %719 = vmatprep.subr.mxu0 0.0
    %720 = vmatpush1.msra.mxu0 0.0
    %721 = vmatprep.subr.mxu0 0.0
    %722 = vmatpush1.msra.mxu0 0.0
    %723 = vmatprep.subr.mxu0 0.0
    %724 = vmatpush1.msra.mxu0 0.0
    %725 = vmatprep.subr.mxu0 0.0
    %726 = vmatpush1.msra.mxu0 0.0
    %727 = vmatprep.subr.mxu0 0.0
    %728 = vmatpush1.msra.mxu0 0.0
    %729 = vmatprep.subr.mxu0 0.0
    %730 = vmatpush1.msra.mxu0 0.0
    %731 = vmatprep.subr.mxu0 0.0
    %732 = vmatpush1.msra.mxu0 0.0
    %733 = vmatprep.subr.mxu0 0.0
    %734 = vmatpush1.msra.mxu0 0.0
    %735 = vmatprep.subr.mxu0 0.0
    %736 = vmatpush1.msra.mxu0 0.0
    %737 = vmatprep.subr.mxu0 0.0
    %738 = vmatpush1.msra.mxu0 0.0
    %739 = vmatprep.subr.mxu0 0.0
    %740 = vmatpush1.msra.mxu0 0.0
    %741 = vmatprep.subr.mxu0 0.0
    %742 = vmatpush1.msra.mxu0 0.0
    %743 = vmatprep.subr.mxu0 0.0
    %744 = vmatpush1.msra.mxu0 0.0
    %745 = vmatprep.subr.mxu0 0.0
    %746 = vmatpush1.msra.mxu0 0.0
    %747 = vmatprep.subr.mxu0 0.0
    %748 = vmatpush1.msra.mxu0 0.0
    %749 = vmatprep.subr.mxu0 0.0
    %750 = vmatpush1.msra.mxu0 0.0
    %751 = vmatprep.subr.mxu0 0.0
    %752 = vmatpush1.msra.mxu0 0.0
    %753 = vmatprep.subr.mxu0 0.0
    %754 = vmatpush1.msra.mxu0 0.0
    %755 = vmatprep.subr.mxu0 0.0
    %756 = vmatpush1.msra.mxu0 0.0
    %757 = vmatprep.subr.mxu0 0.0
    %758 = vmatpush1.msra.mxu0 0.0
    %759 = vmatprep.subr.mxu0 0.0
    %760 = vmatpush1.msra.mxu0 0.0
    %761 = vmatprep.mubr.f32.mxu0 0.0
    %762 = vmatmul.mubr.f32.gmra.mrb[0].mxu0 %v695
    %v763 = vpop.f32.mrb[0].mxu0
    %v764 = vadd.f32 0.0, %v763
    %v765 = vpop.f32.mrb[0].mxu0
    %766 = vdwg.mxu0
    %v768 = vrot.slane %v764, 6
    %v770 = vadd.f32 %v162, %v768
    %v771 = vxor.u32 %v770, 2147483648
    %v772 = vmul.f32 %v771, 1.442695
    %v773 = vpow.pop %v772
    %v774 = vadd.f32 %v773, 1.0
    %v775 = vrcp.pop %v774
    %v776 = vmul.f32 1.0, %v775
    %v777 = vtanh.pop %v770
    %v779 = vrot.slane %v685, 6
    %v781 = vmul.f32 %v776, %v779
    %783 = vrot.lane.b32.xlu0 %v777, 32
    %v784 = vpop.permute.xlu0 %783
    %v786 = vmul.f32 %v776, %v784
    %788 = vrot.lane.b32.xlu0 %v786, 32
    %v789 = vpop.permute.xlu0 %788
    %v791 = vadd.f32 %v781, %v789
    %v792 = vtanh.pop %v791
    %794 = vrot.lane.b32.xlu0 %v792, 32
    %v795 = vpop.permute.xlu0 %794
    %v797 = vmul.f32 %v776, %v795
    %v799 = vrot.slane %v797, 2
    %800 = vrot.lane.b32.xlu0 %v799, 64
    %v801 = vpop.permute.xlu0 %800
    %v802 = vsel %vm169, %v801, 0
    %804 = vmatprep.subr.mxu0 0.0
    %805 = vmatpush1.msra.mxu0 %v165
    %806 = vmatprep.subr.mxu0 0.0
    %807 = vmatpush1.msra.mxu0 %v166
    %808 = vmatprep.subr.mxu0 0.0
    %809 = vmatpush1.msra.mxu0 %v167
    %810 = vmatprep.subr.mxu0 0.0
    %811 = vmatpush1.msra.mxu0 %v168
    %812 = vmatprep.subr.mxu0 0.0
    %813 = vmatpush1.msra.mxu0 0.0
    %814 = vmatprep.subr.mxu0 0.0
    %815 = vmatpush1.msra.mxu0 0.0
    %816 = vmatprep.subr.mxu0 0.0
    %817 = vmatpush1.msra.mxu0 0.0
    %818 = vmatprep.subr.mxu0 0.0
    %819 = vmatpush1.msra.mxu0 0.0
    %820 = vmatprep.subr.mxu0 0.0
    %821 = vmatpush1.msra.mxu0 0.0
    %822 = vmatprep.subr.mxu0 0.0
    %823 = vmatpush1.msra.mxu0 0.0
    %824 = vmatprep.subr.mxu0 0.0
    %825 = vmatpush1.msra.mxu0 0.0
    %826 = vmatprep.subr.mxu0 0.0
    %827 = vmatpush1.msra.mxu0 0.0
    %828 = vmatprep.subr.mxu0 0.0
    %829 = vmatpush1.msra.mxu0 0.0
    %830 = vmatprep.subr.mxu0 0.0
    %831 = vmatpush1.msra.mxu0 0.0
    %832 = vmatprep.subr.mxu0 0.0
    %833 = vmatpush1.msra.mxu0 0.0
    %834 = vmatprep.subr.mxu0 0.0
    %835 = vmatpush1.msra.mxu0 0.0
    %836 = vmatprep.subr.mxu0 0.0
    %837 = vmatpush1.msra.mxu0 0.0
    %838 = vmatprep.subr.mxu0 0.0
    %839 = vmatpush1.msra.mxu0 0.0
    %840 = vmatprep.subr.mxu0 0.0
    %841 = vmatpush1.msra.mxu0 0.0
    %842 = vmatprep.subr.mxu0 0.0
    %843 = vmatpush1.msra.mxu0 0.0
    %844 = vmatprep.subr.mxu0 0.0
    %845 = vmatpush1.msra.mxu0 0.0
    %846 = vmatprep.subr.mxu0 0.0
    %847 = vmatpush1.msra.mxu0 0.0
    %848 = vmatprep.subr.mxu0 0.0
    %849 = vmatpush1.msra.mxu0 0.0
    %850 = vmatprep.subr.mxu0 0.0
    %851 = vmatpush1.msra.mxu0 0.0
    %852 = vmatprep.subr.mxu0 0.0
    %853 = vmatpush1.msra.mxu0 0.0
    %854 = vmatprep.subr.mxu0 0.0
    %855 = vmatpush1.msra.mxu0 0.0
    %856 = vmatprep.subr.mxu0 0.0
    %857 = vmatpush1.msra.mxu0 0.0
    %858 = vmatprep.subr.mxu0 0.0
    %859 = vmatpush1.msra.mxu0 0.0
    %860 = vmatprep.subr.mxu0 0.0
    %861 = vmatpush1.msra.mxu0 0.0
    %862 = vmatprep.subr.mxu0 0.0
    %863 = vmatpush1.msra.mxu0 0.0
    %864 = vmatprep.subr.mxu0 0.0
    %865 = vmatpush1.msra.mxu0 0.0
    %866 = vmatprep.subr.mxu0 0.0
    %867 = vmatpush1.msra.mxu0 0.0
    %868 = vmatprep.mubr.f32.mxu0 0.0
    %869 = vmatmul.mubr.f32.gmra.mrb[0].mxu0 %v802
    %v870 = vpop.f32.mrb[0].mxu0
    %v871 = vadd.f32 0.0, %v870
    %v872 = vpop.f32.mrb[0].mxu0
    %873 = vdwg.mxu0
    %v875 = vrot.slane %v871, 4
    %v877 = vadd.f32 %v162, %v875
    %v878 = vxor.u32 %v877, 2147483648
    %v879 = vmul.f32 %v878, 1.442695
    %v880 = vpow.pop %v879
    %v881 = vadd.f32 %v880, 1.0
    %v882 = vrcp.pop %v881
    %v883 = vmul.f32 1.0, %v882
    %v884 = vtanh.pop %v877
    %v886 = vrot.slane %v791, 6
    %v888 = vmul.f32 %v883, %v886
    %890 = vrot.lane.b32.xlu0 %v884, 32
    %v891 = vpop.permute.xlu0 %890
    %v893 = vmul.f32 %v883, %v891
    %895 = vrot.lane.b32.xlu0 %v893, 32
    %v896 = vpop.permute.xlu0 %895
    %v898 = vadd.f32 %v888, %v896
    %v899 = vtanh.pop %v898
    %901 = vrot.lane.b32.xlu0 %v899, 32
    %v902 = vpop.permute.xlu0 %901
    %v904 = vmul.f32 %v883, %v902
    %v906 = vrot.slane %v904, 4
    %907 = vrot.lane.b32.xlu0 %v906, 64
    %v908 = vpop.permute.xlu0 %907
    %v909 = vsel %vm169, %v908, 0
    %911 = vmatprep.subr.mxu0 0.0
    %912 = vmatpush1.msra.mxu0 %v165
    %913 = vmatprep.subr.mxu0 0.0
    %914 = vmatpush1.msra.mxu0 %v166
    %915 = vmatprep.subr.mxu0 0.0
    %916 = vmatpush1.msra.mxu0 %v167
    %917 = vmatprep.subr.mxu0 0.0
    %918 = vmatpush1.msra.mxu0 %v168
    %919 = vmatprep.subr.mxu0 0.0
    %920 = vmatpush1.msra.mxu0 0.0
    %921 = vmatprep.subr.mxu0 0.0
    %922 = vmatpush1.msra.mxu0 0.0
    %923 = vmatprep.subr.mxu0 0.0
    %924 = vmatpush1.msra.mxu0 0.0
    %925 = vmatprep.subr.mxu0 0.0
    %926 = vmatpush1.msra.mxu0 0.0
    %927 = vmatprep.subr.mxu0 0.0
    %928 = vmatpush1.msra.mxu0 0.0
    %929 = vmatprep.subr.mxu0 0.0
    %930 = vmatpush1.msra.mxu0 0.0
    %931 = vmatprep.subr.mxu0 0.0
    %932 = vmatpush1.msra.mxu0 0.0
    %933 = vmatprep.subr.mxu0 0.0
    %934 = vmatpush1.msra.mxu0 0.0
    %935 = vmatprep.subr.mxu0 0.0
    %936 = vmatpush1.msra.mxu0 0.0
    %937 = vmatprep.subr.mxu0 0.0
    %938 = vmatpush1.msra.mxu0 0.0
    %939 = vmatprep.subr.mxu0 0.0
    %940 = vmatpush1.msra.mxu0 0.0
    %941 = vmatprep.subr.mxu0 0.0
    %942 = vmatpush1.msra.mxu0 0.0
    %943 = vmatprep.subr.mxu0 0.0
    %944 = vmatpush1.msra.mxu0 0.0
    %945 = vmatprep.subr.mxu0 0.0
    %946 = vmatpush1.msra.mxu0 0.0
    %947 = vmatprep.subr.mxu0 0.0
    %948 = vmatpush1.msra.mxu0 0.0
    %949 = vmatprep.subr.mxu0 0.0
    %950 = vmatpush1.msra.mxu0 0.0
    %951 = vmatprep.subr.mxu0 0.0
    %952 = vmatpush1.msra.mxu0 0.0
    %953 = vmatprep.subr.mxu0 0.0
    %954 = vmatpush1.msra.mxu0 0.0
    %955 = vmatprep.subr.mxu0 0.0
    %956 = vmatpush1.msra.mxu0 0.0
    %957 = vmatprep.subr.mxu0 0.0
    %958 = vmatpush1.msra.mxu0 0.0
    %959 = vmatprep.subr.mxu0 0.0
    %960 = vmatpush1.msra.mxu0 0.0
    %961 = vmatprep.subr.mxu0 0.0
    %962 = vmatpush1.msra.mxu0 0.0
    %963 = vmatprep.subr.mxu0 0.0
    %964 = vmatpush1.msra.mxu0 0.0
    %965 = vmatprep.subr.mxu0 0.0
    %966 = vmatpush1.msra.mxu0 0.0
    %967 = vmatprep.subr.mxu0 0.0
    %968 = vmatpush1.msra.mxu0 0.0
    %969 = vmatprep.subr.mxu0 0.0
    %970 = vmatpush1.msra.mxu0 0.0
    %971 = vmatprep.subr.mxu0 0.0
    %972 = vmatpush1.msra.mxu0 0.0
    %973 = vmatprep.subr.mxu0 0.0
    %974 = vmatpush1.msra.mxu0 0.0
    %975 = vmatprep.mubr.f32.mxu0 0.0
    %976 = vmatmul.mubr.f32.gmra.mrb[0].mxu0 %v909
    %v977 = vpop.f32.mrb[0].mxu0
    %v978 = vadd.f32 0.0, %v977
    %v979 = vpop.f32.mrb[0].mxu0
    %980 = vdwg.mxu0
    %v982 = vrot.slane %v978, 2
    %v984 = vadd.f32 %v162, %v982
    %v985 = vxor.u32 %v984, 2147483648
    %v986 = vmul.f32 %v985, 1.442695
    %v987 = vpow.pop %v986
    %v988 = vadd.f32 %v987, 1.0
    %v989 = vrcp.pop %v988
    %v990 = vmul.f32 1.0, %v989
    %v991 = vtanh.pop %v984
    %v993 = vrot.slane %v898, 6
    %v995 = vmul.f32 %v990, %v993
    %997 = vrot.lane.b32.xlu0 %v991, 32
    %v998 = vpop.permute.xlu0 %997
    %v1000 = vmul.f32 %v990, %v998
    %1002 = vrot.lane.b32.xlu0 %v1000, 32
    %v1003 = vpop.permute.xlu0 %1002
    %v1005 = vadd.f32 %v995, %v1003
    %v1006 = vtanh.pop %v1005
    %1008 = vrot.lane.b32.xlu0 %v1006, 32
    %v1009 = vpop.permute.xlu0 %1008
    %v1011 = vmul.f32 %v990, %v1009
    %vm1012 = vcmask 1041408
    %v1013 = vsel %vm1012, %v267, %v373
    %v1014 = vsel %vm86, %v1013, %v480
    %vm1015 = vcmask 1045504
    %v1016 = vsel %vm1015, %v1014, %v587
    %v1017 = vsel %vm1012, %v691, %v797
    %v1018 = vsel %vm86, %v1017, %v904
    %v1019 = vsel %vm1015, %v1018, %v1011
    %v1020 = vld [vmem:[%s4] sm:$0xff]
    %v1021 = vld [vmem:[%s4 + $0x8] sm:$0xff]
    %v1022 = vld [vmem:[%s4 + $0x10] sm:$0xff]
    %v1023 = vld [vmem:[%s4 + $0x18] sm:$0xff]
    %v1024 = vld [vmem:[%s6] sm:$0x1]
    %v1026 = vlaneseq
    %v1027 = vshrl.u32 %v1026, 7
    %v1028 = vsub.s32 0, %v1027
    %v1029 = vrot.slane %v1024, %v1028
    %1033 = vrot.lane.b32.xlu0 %v1016, 64
    %v1034 = vpop.permute.xlu0 %1033
    %1035 = vrot.lane.b32.xlu0 %v1019, 64
    %v1036 = vpop.permute.xlu0 %1035
    %v1037 = vsel %vm169, %v1034, 0
    %v1039 = vsel %vm169, %v1036, 0
    %1041 = vmatprep.subr.mxu0 0.0
    %1042 = vmatpush1.msra.mxu0 %v1020
    %1043 = vmatprep.subr.mxu0 0.0
    %1044 = vmatpush1.msra.mxu0 %v1021
    %1045 = vmatprep.subr.mxu0 0.0
    %1046 = vmatpush1.msra.mxu0 %v1022
    %1047 = vmatprep.subr.mxu0 0.0
    %1048 = vmatpush1.msra.mxu0 %v1023
    %1049 = vmatprep.subr.mxu0 0.0
    %1050 = vmatpush1.msra.mxu0 0.0
    %1051 = vmatprep.subr.mxu0 0.0
    %1052 = vmatpush1.msra.mxu0 0.0
    %1053 = vmatprep.subr.mxu0 0.0
    %1054 = vmatpush1.msra.mxu0 0.0
    %1055 = vmatprep.subr.mxu0 0.0
    %1056 = vmatpush1.msra.mxu0 0.0
    %1057 = vmatprep.subr.mxu0 0.0
    %1058 = vmatpush1.msra.mxu0 0.0
    %1059 = vmatprep.subr.mxu0 0.0
    %1060 = vmatpush1.msra.mxu0 0.0
    %1061 = vmatprep.subr.mxu0 0.0
    %1062 = vmatpush1.msra.mxu0 0.0
    %1063 = vmatprep.subr.mxu0 0.0
    %1064 = vmatpush1.msra.mxu0 0.0
    %1065 = vmatprep.subr.mxu0 0.0
    %1066 = vmatpush1.msra.mxu0 0.0
    %1067 = vmatprep.subr.mxu0 0.0
    %1068 = vmatpush1.msra.mxu0 0.0
    %1069 = vmatprep.subr.mxu0 0.0
    %1070 = vmatpush1.msra.mxu0 0.0
    %1071 = vmatprep.subr.mxu0 0.0
    %1072 = vmatpush1.msra.mxu0 0.0
    %1073 = vmatprep.subr.mxu0 0.0
    %1074 = vmatpush1.msra.mxu0 0.0
    %1075 = vmatprep.subr.mxu0 0.0
    %1076 = vmatpush1.msra.mxu0 0.0
    %1077 = vmatprep.subr.mxu0 0.0
    %1078 = vmatpush1.msra.mxu0 0.0
    %1079 = vmatprep.subr.mxu0 0.0
    %1080 = vmatpush1.msra.mxu0 0.0
    %1081 = vmatprep.subr.mxu0 0.0
    %1082 = vmatpush1.msra.mxu0 0.0
    %1083 = vmatprep.subr.mxu0 0.0
    %1084 = vmatpush1.msra.mxu0 0.0
    %1085 = vmatprep.subr.mxu0 0.0
    %1086 = vmatpush1.msra.mxu0 0.0
    %1087 = vmatprep.subr.mxu0 0.0
    %1088 = vmatpush1.msra.mxu0 0.0
    %1089 = vmatprep.subr.mxu0 0.0
    %1090 = vmatpush1.msra.mxu0 0.0
    %1091 = vmatprep.subr.mxu0 0.0
    %1092 = vmatpush1.msra.mxu0 0.0
    %1093 = vmatprep.subr.mxu0 0.0
    %1094 = vmatpush1.msra.mxu0 0.0
    %1095 = vmatprep.subr.mxu0 0.0
    %1096 = vmatpush1.msra.mxu0 0.0
    %1097 = vmatprep.subr.mxu0 0.0
    %1098 = vmatpush1.msra.mxu0 0.0
    %1099 = vmatprep.subr.mxu0 0.0
    %1100 = vmatpush1.msra.mxu0 0.0
    %1101 = vmatprep.subr.mxu0 0.0
    %1102 = vmatpush1.msra.mxu0 0.0
    %1103 = vmatprep.subr.mxu0 0.0
    %1104 = vmatpush1.msra.mxu0 0.0
    %1105 = vmatprep.mubr.f32.mxu0 0.0
    %1106 = vmatmul.mubr.f32.gmra.mrb[0].mxu0 %v1037
    %v1107 = vpop.f32.mrb[0].mxu0
    %v1108 = vadd.f32 %v1029, %v1107
    %v1109 = vpop.f32.mrb[0].mxu0
    %1110 = vmatprep.mubr.f32.mxu0 0.0
    %1111 = vmatmul.mubr.f32.gmra.mrb[0].mxu0 %v1039
    %v1112 = vpop.f32.mrb[0].mxu0
    %v1113 = vadd.f32 %v1029, %v1112
    %v1114 = vpop.f32.mrb[0].mxu0
    %1115 = vdwg.mxu0
    %v1116 = vld [vmem:[#allocation4] sm:$0xff]
    %v1117 = vld [vmem:[#allocation4 + $0x8] sm:$0xff]
    %v1118 = vld [vmem:[#allocation4 + $0x10] sm:$0xff]
    %v1119 = vld [vmem:[#allocation4 + $0x18] sm:$0xff]
    %1120 = vmatprep.subr.mxu0 0.0
    %1121 = vmatpush1.msra.mxu0 %v1116
    %1122 = vmatprep.subr.mxu0 0.0
    %1123 = vmatpush1.msra.mxu0 %v1117
    %1124 = vmatprep.subr.mxu0 0.0
    %1125 = vmatpush1.msra.mxu0 %v1118
    %1126 = vmatprep.subr.mxu0 0.0
    %1127 = vmatpush1.msra.mxu0 %v1119
    %1128 = vmatprep.subr.mxu0 0.0
    %1129 = vmatpush1.msra.mxu0 0.0
    %1130 = vmatprep.subr.mxu0 0.0
    %1131 = vmatpush1.msra.mxu0 0.0
    %1132 = vmatprep.subr.mxu0 0.0
    %1133 = vmatpush1.msra.mxu0 0.0
    %1134 = vmatprep.subr.mxu0 0.0
    %1135 = vmatpush1.msra.mxu0 0.0
    %1136 = vmatprep.subr.mxu0 0.0
    %1137 = vmatpush1.msra.mxu0 0.0
    %1138 = vmatprep.subr.mxu0 0.0
    %1139 = vmatpush1.msra.mxu0 0.0
    %1140 = vmatprep.subr.mxu0 0.0
    %1141 = vmatpush1.msra.mxu0 0.0
    %1142 = vmatprep.subr.mxu0 0.0
    %1143 = vmatpush1.msra.mxu0 0.0
    %1144 = vmatprep.subr.mxu0 0.0
    %1145 = vmatpush1.msra.mxu0 0.0
    %1146 = vmatprep.subr.mxu0 0.0
    %1147 = vmatpush1.msra.mxu0 0.0
    %1148 = vmatprep.subr.mxu0 0.0
    %1149 = vmatpush1.msra.mxu0 0.0
    %1150 = vmatprep.subr.mxu0 0.0
    %1151 = vmatpush1.msra.mxu0 0.0
    %1152 = vmatprep.subr.mxu0 0.0
    %1153 = vmatpush1.msra.mxu0 0.0
    %1154 = vmatprep.subr.mxu0 0.0
    %1155 = vmatpush1.msra.mxu0 0.0
    %1156 = vmatprep.subr.mxu0 0.0
    %1157 = vmatpush1.msra.mxu0 0.0
    %1158 = vmatprep.subr.mxu0 0.0
    %1159 = vmatpush1.msra.mxu0 0.0
    %1160 = vmatprep.subr.mxu0 0.0
    %1161 = vmatpush1.msra.mxu0 0.0
    %1162 = vmatprep.subr.mxu0 0.0
    %1163 = vmatpush1.msra.mxu0 0.0
    %1164 = vmatprep.subr.mxu0 0.0
    %1165 = vmatpush1.msra.mxu0 0.0
    %1166 = vmatprep.subr.mxu0 0.0
    %1167 = vmatpush1.msra.mxu0 0.0
    %1168 = vmatprep.subr.mxu0 0.0
    %1169 = vmatpush1.msra.mxu0 0.0
    %1170 = vmatprep.subr.mxu0 0.0
    %1171 = vmatpush1.msra.mxu0 0.0
    %1172 = vmatprep.subr.mxu0 0.0
    %1173 = vmatpush1.msra.mxu0 0.0
    %1174 = vmatprep.subr.mxu0 0.0
    %1175 = vmatpush1.msra.mxu0 0.0
    %1176 = vmatprep.subr.mxu0 0.0
    %1177 = vmatpush1.msra.mxu0 0.0
    %1178 = vmatprep.subr.mxu0 0.0
    %1179 = vmatpush1.msra.mxu0 0.0
    %1180 = vmatprep.subr.mxu0 0.0
    %1181 = vmatpush1.msra.mxu0 0.0
    %1182 = vmatprep.subr.mxu0 0.0
    %1183 = vmatpush1.msra.mxu0 0.0
    %1184 = vmatprep.mubr.f32.mxu0 0.0
    %1185 = vmatmul.mubr.f32.gmra.mrb[0].mxu0 %v171
    %v1186 = vpop.f32.mrb[0].mxu0
    %v1187 = vadd.f32 0.0, %v1186
    %v1188 = vpop.f32.mrb[0].mxu0
    %1189 = vdwg.mxu0
    %v1190 = vadd.f32 %v1108, %v1187
    %v1191 = vxor.u32 %v1190, 2147483648
    %v1192 = vmul.f32 %v1191, 1.442695
    %v1193 = vpow.pop %v1192
    %v1194 = vadd.f32 %v1193, 1.0
    %v1195 = vrcp.pop %v1194
    %v1196 = vmul.f32 1.0, %v1195
    %v1197 = vtanh.pop %v1190
    %v1198 = vmul.f32 %v1196, 0.0
    %1200 = vrot.lane.b32.xlu0 %v1197, 32
    %v1201 = vpop.permute.xlu0 %1200
    %v1203 = vmul.f32 %v1196, %v1201
    %1205 = vrot.lane.b32.xlu0 %v1203, 32
    %v1206 = vpop.permute.xlu0 %1205
    %v1208 = vadd.f32 %v1198, %v1206
    %v1209 = vtanh.pop %v1208
    %1211 = vrot.lane.b32.xlu0 %v1209, 32
    %v1212 = vpop.permute.xlu0 %1211
    %v1214 = vmul.f32 %v1196, %v1212
    %1216 = vrot.lane.b32.xlu0 %v1214, 64
    %v1217 = vpop.permute.xlu0 %1216
    %v1218 = vsel %vm169, %v1217, 0
    %1220 = vmatprep.subr.mxu0 0.0
    %1221 = vmatpush1.msra.mxu0 %v1116
    %1222 = vmatprep.subr.mxu0 0.0
    %1223 = vmatpush1.msra.mxu0 %v1117
    %1224 = vmatprep.subr.mxu0 0.0
    %1225 = vmatpush1.msra.mxu0 %v1118
    %1226 = vmatprep.subr.mxu0 0.0
    %1227 = vmatpush1.msra.mxu0 %v1119
    %1228 = vmatprep.subr.mxu0 0.0
    %1229 = vmatpush1.msra.mxu0 0.0
    %1230 = vmatprep.subr.mxu0 0.0
    %1231 = vmatpush1.msra.mxu0 0.0
    %1232 = vmatprep.subr.mxu0 0.0
    %1233 = vmatpush1.msra.mxu0 0.0
    %1234 = vmatprep.subr.mxu0 0.0
    %1235 = vmatpush1.msra.mxu0 0.0
    %1236 = vmatprep.subr.mxu0 0.0
    %1237 = vmatpush1.msra.mxu0 0.0
    %1238 = vmatprep.subr.mxu0 0.0
    %1239 = vmatpush1.msra.mxu0 0.0
    %1240 = vmatprep.subr.mxu0 0.0
    %1241 = vmatpush1.msra.mxu0 0.0
    %1242 = vmatprep.subr.mxu0 0.0
    %1243 = vmatpush1.msra.mxu0 0.0
    %1244 = vmatprep.subr.mxu0 0.0
    %1245 = vmatpush1.msra.mxu0 0.0
    %1246 = vmatprep.subr.mxu0 0.0
    %1247 = vmatpush1.msra.mxu0 0.0
    %1248 = vmatprep.subr.mxu0 0.0
    %1249 = vmatpush1.msra.mxu0 0.0
    %1250 = vmatprep.subr.mxu0 0.0
    %1251 = vmatpush1.msra.mxu0 0.0
    %1252 = vmatprep.subr.mxu0 0.0
    %1253 = vmatpush1.msra.mxu0 0.0
    %1254 = vmatprep.subr.mxu0 0.0
    %1255 = vmatpush1.msra.mxu0 0.0
    %1256 = vmatprep.subr.mxu0 0.0
    %1257 = vmatpush1.msra.mxu0 0.0
    %1258 = vmatprep.subr.mxu0 0.0
    %1259 = vmatpush1.msra.mxu0 0.0
    %1260 = vmatprep.subr.mxu0 0.0
    %1261 = vmatpush1.msra.mxu0 0.0
    %1262 = vmatprep.subr.mxu0 0.0
    %1263 = vmatpush1.msra.mxu0 0.0
    %1264 = vmatprep.subr.mxu0 0.0
    %1265 = vmatpush1.msra.mxu0 0.0
    %1266 = vmatprep.subr.mxu0 0.0
    %1267 = vmatpush1.msra.mxu0 0.0
    %1268 = vmatprep.subr.mxu0 0.0
    %1269 = vmatpush1.msra.mxu0 0.0
    %1270 = vmatprep.subr.mxu0 0.0
    %1271 = vmatpush1.msra.mxu0 0.0
    %1272 = vmatprep.subr.mxu0 0.0
    %1273 = vmatpush1.msra.mxu0 0.0
    %1274 = vmatprep.subr.mxu0 0.0
    %1275 = vmatpush1.msra.mxu0 0.0
    %1276 = vmatprep.subr.mxu0 0.0
    %1277 = vmatpush1.msra.mxu0 0.0
    %1278 = vmatprep.subr.mxu0 0.0
    %1279 = vmatpush1.msra.mxu0 0.0
    %1280 = vmatprep.subr.mxu0 0.0
    %1281 = vmatpush1.msra.mxu0 0.0
    %1282 = vmatprep.subr.mxu0 0.0
    %1283 = vmatpush1.msra.mxu0 0.0
    %1284 = vmatprep.mubr.f32.mxu0 0.0
    %1285 = vmatmul.mubr.f32.gmra.mrb[0].mxu0 %v1218
    %v1286 = vpop.f32.mrb[0].mxu0
    %v1287 = vadd.f32 0.0, %v1286
    %v1288 = vpop.f32.mrb[0].mxu0
    %1289 = vdwg.mxu0
    %v1291 = vrot.slane %v1287, 6
    %v1293 = vadd.f32 %v1108, %v1291
    %v1294 = vxor.u32 %v1293, 2147483648
    %v1295 = vmul.f32 %v1294, 1.442695
    %v1296 = vpow.pop %v1295
    %v1297 = vadd.f32 %v1296, 1.0
    %v1298 = vrcp.pop %v1297
    %v1299 = vmul.f32 1.0, %v1298
    %v1300 = vtanh.pop %v1293
    %v1302 = vrot.slane %v1208, 6
    %v1304 = vmul.f32 %v1299, %v1302
    %1306 = vrot.lane.b32.xlu0 %v1300, 32
    %v1307 = vpop.permute.xlu0 %1306
    %v1309 = vmul.f32 %v1299, %v1307
    %1311 = vrot.lane.b32.xlu0 %v1309, 32
    %v1312 = vpop.permute.xlu0 %1311
    %v1314 = vadd.f32 %v1304, %v1312
    %v1315 = vtanh.pop %v1314
    %1317 = vrot.lane.b32.xlu0 %v1315, 32
    %v1318 = vpop.permute.xlu0 %1317
    %v1320 = vmul.f32 %v1299, %v1318
    %v1322 = vrot.slane %v1320, 2
    %1323 = vrot.lane.b32.xlu0 %v1322, 64
    %v1324 = vpop.permute.xlu0 %1323
    %v1325 = vsel %vm169, %v1324, 0
    %1327 = vmatprep.subr.mxu0 0.0
    %1328 = vmatpush1.msra.mxu0 %v1116
    %1329 = vmatprep.subr.mxu0 0.0
    %1330 = vmatpush1.msra.mxu0 %v1117
    %1331 = vmatprep.subr.mxu0 0.0
    %1332 = vmatpush1.msra.mxu0 %v1118
    %1333 = vmatprep.subr.mxu0 0.0
    %1334 = vmatpush1.msra.mxu0 %v1119
    %1335 = vmatprep.subr.mxu0 0.0
    %1336 = vmatpush1.msra.mxu0 0.0
    %1337 = vmatprep.subr.mxu0 0.0
    %1338 = vmatpush1.msra.mxu0 0.0
    %1339 = vmatprep.subr.mxu0 0.0
    %1340 = vmatpush1.msra.mxu0 0.0
    %1341 = vmatprep.subr.mxu0 0.0
    %1342 = vmatpush1.msra.mxu0 0.0
    %1343 = vmatprep.subr.mxu0 0.0
    %1344 = vmatpush1.msra.mxu0 0.0
    %1345 = vmatprep.subr.mxu0 0.0
    %1346 = vmatpush1.msra.mxu0 0.0
    %1347 = vmatprep.subr.mxu0 0.0
    %1348 = vmatpush1.msra.mxu0 0.0
    %1349 = vmatprep.subr.mxu0 0.0
    %1350 = vmatpush1.msra.mxu0 0.0
    %1351 = vmatprep.subr.mxu0 0.0
    %1352 = vmatpush1.msra.mxu0 0.0
    %1353 = vmatprep.subr.mxu0 0.0
    %1354 = vmatpush1.msra.mxu0 0.0
    %1355 = vmatprep.subr.mxu0 0.0
    %1356 = vmatpush1.msra.mxu0 0.0
    %1357 = vmatprep.subr.mxu0 0.0
    %1358 = vmatpush1.msra.mxu0 0.0
    %1359 = vmatprep.subr.mxu0 0.0
    %1360 = vmatpush1.msra.mxu0 0.0
    %1361 = vmatprep.subr.mxu0 0.0
    %1362 = vmatpush1.msra.mxu0 0.0
    %1363 = vmatprep.subr.mxu0 0.0
    %1364 = vmatpush1.msra.mxu0 0.0
    %1365 = vmatprep.subr.mxu0 0.0
    %1366 = vmatpush1.msra.mxu0 0.0
    %1367 = vmatprep.subr.mxu0 0.0
    %1368 = vmatpush1.msra.mxu0 0.0
    %1369 = vmatprep.subr.mxu0 0.0
    %1370 = vmatpush1.msra.mxu0 0.0
    %1371 = vmatprep.subr.mxu0 0.0
    %1372 = vmatpush1.msra.mxu0 0.0
    %1373 = vmatprep.subr.mxu0 0.0
    %1374 = vmatpush1.msra.mxu0 0.0
    %1375 = vmatprep.subr.mxu0 0.0
    %1376 = vmatpush1.msra.mxu0 0.0
    %1377 = vmatprep.subr.mxu0 0.0
    %1378 = vmatpush1.msra.mxu0 0.0
    %1379 = vmatprep.subr.mxu0 0.0
    %1380 = vmatpush1.msra.mxu0 0.0
    %1381 = vmatprep.subr.mxu0 0.0
    %1382 = vmatpush1.msra.mxu0 0.0
    %1383 = vmatprep.subr.mxu0 0.0
    %1384 = vmatpush1.msra.mxu0 0.0
    %1385 = vmatprep.subr.mxu0 0.0
    %1386 = vmatpush1.msra.mxu0 0.0
    %1387 = vmatprep.subr.mxu0 0.0
    %1388 = vmatpush1.msra.mxu0 0.0
    %1389 = vmatprep.subr.mxu0 0.0
    %1390 = vmatpush1.msra.mxu0 0.0
    %1391 = vmatprep.mubr.f32.mxu0 0.0
    %1392 = vmatmul.mubr.f32.gmra.mrb[0].mxu0 %v1325
    %v1393 = vpop.f32.mrb[0].mxu0
    %v1394 = vadd.f32 0.0, %v1393
    %v1395 = vpop.f32.mrb[0].mxu0
    %1396 = vdwg.mxu0
    %v1398 = vrot.slane %v1394, 4
    %v1400 = vadd.f32 %v1108, %v1398
    %v1401 = vxor.u32 %v1400, 2147483648
    %v1402 = vmul.f32 %v1401, 1.442695
    %v1403 = vpow.pop %v1402
    %v1404 = vadd.f32 %v1403, 1.0
    %v1405 = vrcp.pop %v1404
    %v1406 = vmul.f32 1.0, %v1405
    %v1407 = vtanh.pop %v1400
    %v1409 = vrot.slane %v1314, 6
    %v1411 = vmul.f32 %v1406, %v1409
    %1413 = vrot.lane.b32.xlu0 %v1407, 32
    %v1414 = vpop.permute.xlu0 %1413
    %v1416 = vmul.f32 %v1406, %v1414
    %1418 = vrot.lane.b32.xlu0 %v1416, 32
    %v1419 = vpop.permute.xlu0 %1418
    %v1421 = vadd.f32 %v1411, %v1419
    %v1422 = vtanh.pop %v1421
    %1424 = vrot.lane.b32.xlu0 %v1422, 32
    %v1425 = vpop.permute.xlu0 %1424
    %v1427 = vmul.f32 %v1406, %v1425
    %v1429 = vrot.slane %v1427, 4
    %1430 = vrot.lane.b32.xlu0 %v1429, 64
    %v1431 = vpop.permute.xlu0 %1430
    %v1432 = vsel %vm169, %v1431, 0
    %1434 = vmatprep.subr.mxu0 0.0
    %1435 = vmatpush1.msra.mxu0 %v1116
    %1436 = vmatprep.subr.mxu0 0.0
    %1437 = vmatpush1.msra.mxu0 %v1117
    %1438 = vmatprep.subr.mxu0 0.0
    %1439 = vmatpush1.msra.mxu0 %v1118
    %1440 = vmatprep.subr.mxu0 0.0
    %1441 = vmatpush1.msra.mxu0 %v1119
    %1442 = vmatprep.subr.mxu0 0.0
    %1443 = vmatpush1.msra.mxu0 0.0
    %1444 = vmatprep.subr.mxu0 0.0
    %1445 = vmatpush1.msra.mxu0 0.0
    %1446 = vmatprep.subr.mxu0 0.0
    %1447 = vmatpush1.msra.mxu0 0.0
    %1448 = vmatprep.subr.mxu0 0.0
    %1449 = vmatpush1.msra.mxu0 0.0
    %1450 = vmatprep.subr.mxu0 0.0
    %1451 = vmatpush1.msra.mxu0 0.0
    %1452 = vmatprep.subr.mxu0 0.0
    %1453 = vmatpush1.msra.mxu0 0.0
    %1454 = vmatprep.subr.mxu0 0.0
    %1455 = vmatpush1.msra.mxu0 0.0
    %1456 = vmatprep.subr.mxu0 0.0
    %1457 = vmatpush1.msra.mxu0 0.0
    %1458 = vmatprep.subr.mxu0 0.0
    %1459 = vmatpush1.msra.mxu0 0.0
    %1460 = vmatprep.subr.mxu0 0.0
    %1461 = vmatpush1.msra.mxu0 0.0
    %1462 = vmatprep.subr.mxu0 0.0
    %1463 = vmatpush1.msra.mxu0 0.0
    %1464 = vmatprep.subr.mxu0 0.0
    %1465 = vmatpush1.msra.mxu0 0.0
    %1466 = vmatprep.subr.mxu0 0.0
    %1467 = vmatpush1.msra.mxu0 0.0
    %1468 = vmatprep.subr.mxu0 0.0
    %1469 = vmatpush1.msra.mxu0 0.0
    %1470 = vmatprep.subr.mxu0 0.0
    %1471 = vmatpush1.msra.mxu0 0.0
    %1472 = vmatprep.subr.mxu0 0.0
    %1473 = vmatpush1.msra.mxu0 0.0
    %1474 = vmatprep.subr.mxu0 0.0
    %1475 = vmatpush1.msra.mxu0 0.0
    %1476 = vmatprep.subr.mxu0 0.0
    %1477 = vmatpush1.msra.mxu0 0.0
    %1478 = vmatprep.subr.mxu0 0.0
    %1479 = vmatpush1.msra.mxu0 0.0
    %1480 = vmatprep.subr.mxu0 0.0
    %1481 = vmatpush1.msra.mxu0 0.0
    %1482 = vmatprep.subr.mxu0 0.0
    %1483 = vmatpush1.msra.mxu0 0.0
    %1484 = vmatprep.subr.mxu0 0.0
    %1485 = vmatpush1.msra.mxu0 0.0
    %1486 = vmatprep.subr.mxu0 0.0
    %1487 = vmatpush1.msra.mxu0 0.0
    %1488 = vmatprep.subr.mxu0 0.0
    %1489 = vmatpush1.msra.mxu0 0.0
    %1490 = vmatprep.subr.mxu0 0.0
    %1491 = vmatpush1.msra.mxu0 0.0
    %1492 = vmatprep.subr.mxu0 0.0
    %1493 = vmatpush1.msra.mxu0 0.0
    %1494 = vmatprep.subr.mxu0 0.0
    %1495 = vmatpush1.msra.mxu0 0.0
    %1496 = vmatprep.subr.mxu0 0.0
    %1497 = vmatpush1.msra.mxu0 0.0
    %1498 = vmatprep.mubr.f32.mxu0 0.0
    %1499 = vmatmul.mubr.f32.gmra.mrb[0].mxu0 %v1432
    %v1500 = vpop.f32.mrb[0].mxu0
    %v1501 = vadd.f32 0.0, %v1500
    %v1502 = vpop.f32.mrb[0].mxu0
    %1503 = vdwg.mxu0
    %v1505 = vrot.slane %v1501, 2
    %v1507 = vadd.f32 %v1108, %v1505
    %v1508 = vxor.u32 %v1507, 2147483648
    %v1509 = vmul.f32 %v1508, 1.442695
    %v1510 = vpow.pop %v1509
    %v1511 = vadd.f32 %v1510, 1.0
    %v1512 = vrcp.pop %v1511
    %v1513 = vmul.f32 1.0, %v1512
    %v1514 = vtanh.pop %v1507
    %v1516 = vrot.slane %v1421, 6
    %v1518 = vmul.f32 %v1513, %v1516
    %1520 = vrot.lane.b32.xlu0 %v1514, 32
    %v1521 = vpop.permute.xlu0 %1520
    %v1523 = vmul.f32 %v1513, %v1521
    %1525 = vrot.lane.b32.xlu0 %v1523, 32
    %v1526 = vpop.permute.xlu0 %1525
    %v1528 = vadd.f32 %v1518, %v1526
    %v1529 = vtanh.pop %v1528
    %1531 = vrot.lane.b32.xlu0 %v1529, 32
    %v1532 = vpop.permute.xlu0 %1531
    %v1534 = vmul.f32 %v1513, %v1532
    %v1536 = vrot.slane %v1534, 6
    %1537 = vrot.lane.b32.xlu0 %v1536, 64
    %v1538 = vpop.permute.xlu0 %1537
    %v1539 = vsel %vm169, %v1538, 0
    %1541 = vmatprep.subr.mxu0 0.0
    %1542 = vmatpush1.msra.mxu0 %v1116
    %1543 = vmatprep.subr.mxu0 0.0
    %1544 = vmatpush1.msra.mxu0 %v1117
    %1545 = vmatprep.subr.mxu0 0.0
    %1546 = vmatpush1.msra.mxu0 %v1118
    %1547 = vmatprep.subr.mxu0 0.0
    %1548 = vmatpush1.msra.mxu0 %v1119
    %1549 = vmatprep.subr.mxu0 0.0
    %1550 = vmatpush1.msra.mxu0 0.0
    %1551 = vmatprep.subr.mxu0 0.0
    %1552 = vmatpush1.msra.mxu0 0.0
    %1553 = vmatprep.subr.mxu0 0.0
    %1554 = vmatpush1.msra.mxu0 0.0
    %1555 = vmatprep.subr.mxu0 0.0
    %1556 = vmatpush1.msra.mxu0 0.0
    %1557 = vmatprep.subr.mxu0 0.0
    %1558 = vmatpush1.msra.mxu0 0.0
    %1559 = vmatprep.subr.mxu0 0.0
    %1560 = vmatpush1.msra.mxu0 0.0
    %1561 = vmatprep.subr.mxu0 0.0
    %1562 = vmatpush1.msra.mxu0 0.0
    %1563 = vmatprep.subr.mxu0 0.0
    %1564 = vmatpush1.msra.mxu0 0.0
    %1565 = vmatprep.subr.mxu0 0.0
    %1566 = vmatpush1.msra.mxu0 0.0
    %1567 = vmatprep.subr.mxu0 0.0
    %1568 = vmatpush1.msra.mxu0 0.0
    %1569 = vmatprep.subr.mxu0 0.0
    %1570 = vmatpush1.msra.mxu0 0.0
    %1571 = vmatprep.subr.mxu0 0.0
    %1572 = vmatpush1.msra.mxu0 0.0
    %1573 = vmatprep.subr.mxu0 0.0
    %1574 = vmatpush1.msra.mxu0 0.0
    %1575 = vmatprep.subr.mxu0 0.0
    %1576 = vmatpush1.msra.mxu0 0.0
    %1577 = vmatprep.subr.mxu0 0.0
    %1578 = vmatpush1.msra.mxu0 0.0
    %1579 = vmatprep.subr.mxu0 0.0
    %1580 = vmatpush1.msra.mxu0 0.0
    %1581 = vmatprep.subr.mxu0 0.0
    %1582 = vmatpush1.msra.mxu0 0.0
    %1583 = vmatprep.subr.mxu0 0.0
    %1584 = vmatpush1.msra.mxu0 0.0
    %1585 = vmatprep.subr.mxu0 0.0
    %1586 = vmatpush1.msra.mxu0 0.0
    %1587 = vmatprep.subr.mxu0 0.0
    %1588 = vmatpush1.msra.mxu0 0.0
    %1589 = vmatprep.subr.mxu0 0.0
    %1590 = vmatpush1.msra.mxu0 0.0
    %1591 = vmatprep.subr.mxu0 0.0
    %1592 = vmatpush1.msra.mxu0 0.0
    %1593 = vmatprep.subr.mxu0 0.0
    %1594 = vmatpush1.msra.mxu0 0.0
    %1595 = vmatprep.subr.mxu0 0.0
    %1596 = vmatpush1.msra.mxu0 0.0
    %1597 = vmatprep.subr.mxu0 0.0
    %1598 = vmatpush1.msra.mxu0 0.0
    %1599 = vmatprep.subr.mxu0 0.0
    %1600 = vmatpush1.msra.mxu0 0.0
    %1601 = vmatprep.subr.mxu0 0.0
    %1602 = vmatpush1.msra.mxu0 0.0
    %1603 = vmatprep.subr.mxu0 0.0
    %1604 = vmatpush1.msra.mxu0 0.0
    %1605 = vmatprep.mubr.f32.mxu0 0.0
    %1606 = vmatmul.mubr.f32.gmra.mrb[0].mxu0 %v1539
    %v1607 = vpop.f32.mrb[0].mxu0
    %v1608 = vadd.f32 0.0, %v1607
    %v1609 = vpop.f32.mrb[0].mxu0
    %1610 = vdwg.mxu0
    %v1611 = vadd.f32 %v1113, %v1608
    %v1612 = vxor.u32 %v1611, 2147483648
    %v1613 = vmul.f32 %v1612, 1.442695
    %v1614 = vpow.pop %v1613
    %v1615 = vadd.f32 %v1614, 1.0
    %v1616 = vrcp.pop %v1615
    %v1617 = vmul.f32 1.0, %v1616
    %v1618 = vtanh.pop %v1611
    %v1620 = vrot.slane %v1528, 6
    %v1622 = vmul.f32 %v1617, %v1620
    %1624 = vrot.lane.b32.xlu0 %v1618, 32
    %v1625 = vpop.permute.xlu0 %1624
    %v1627 = vmul.f32 %v1617, %v1625
    %1629 = vrot.lane.b32.xlu0 %v1627, 32
    %v1630 = vpop.permute.xlu0 %1629
    %v1632 = vadd.f32 %v1622, %v1630
    %v1633 = vtanh.pop %v1632
    %1635 = vrot.lane.b32.xlu0 %v1633, 32
    %v1636 = vpop.permute.xlu0 %1635
    %v1638 = vmul.f32 %v1617, %v1636
    %1640 = vrot.lane.b32.xlu0 %v1638, 64
    %v1641 = vpop.permute.xlu0 %1640
    %v1642 = vsel %vm169, %v1641, 0
    %1644 = vmatprep.subr.mxu0 0.0
    %1645 = vmatpush1.msra.mxu0 %v1116
    %1646 = vmatprep.subr.mxu0 0.0
    %1647 = vmatpush1.msra.mxu0 %v1117
    %1648 = vmatprep.subr.mxu0 0.0
    %1649 = vmatpush1.msra.mxu0 %v1118
    %1650 = vmatprep.subr.mxu0 0.0
    %1651 = vmatpush1.msra.mxu0 %v1119
    %1652 = vmatprep.subr.mxu0 0.0
    %1653 = vmatpush1.msra.mxu0 0.0
    %1654 = vmatprep.subr.mxu0 0.0
    %1655 = vmatpush1.msra.mxu0 0.0
    %1656 = vmatprep.subr.mxu0 0.0
    %1657 = vmatpush1.msra.mxu0 0.0
    %1658 = vmatprep.subr.mxu0 0.0
    %1659 = vmatpush1.msra.mxu0 0.0
    %1660 = vmatprep.subr.mxu0 0.0
    %1661 = vmatpush1.msra.mxu0 0.0
    %1662 = vmatprep.subr.mxu0 0.0
    %1663 = vmatpush1.msra.mxu0 0.0
    %1664 = vmatprep.subr.mxu0 0.0
    %1665 = vmatpush1.msra.mxu0 0.0
    %1666 = vmatprep.subr.mxu0 0.0
    %1667 = vmatpush1.msra.mxu0 0.0
    %1668 = vmatprep.subr.mxu0 0.0
    %1669 = vmatpush1.msra.mxu0 0.0
    %1670 = vmatprep.subr.mxu0 0.0
    %1671 = vmatpush1.msra.mxu0 0.0
    %1672 = vmatprep.subr.mxu0 0.0
    %1673 = vmatpush1.msra.mxu0 0.0
    %1674 = vmatprep.subr.mxu0 0.0
    %1675 = vmatpush1.msra.mxu0 0.0
    %1676 = vmatprep.subr.mxu0 0.0
    %1677 = vmatpush1.msra.mxu0 0.0
    %1678 = vmatprep.subr.mxu0 0.0
    %1679 = vmatpush1.msra.mxu0 0.0
    %1680 = vmatprep.subr.mxu0 0.0
    %1681 = vmatpush1.msra.mxu0 0.0
    %1682 = vmatprep.subr.mxu0 0.0
    %1683 = vmatpush1.msra.mxu0 0.0
    %1684 = vmatprep.subr.mxu0 0.0
    %1685 = vmatpush1.msra.mxu0 0.0
    %1686 = vmatprep.subr.mxu0 0.0
    %1687 = vmatpush1.msra.mxu0 0.0
    %1688 = vmatprep.subr.mxu0 0.0
    %1689 = vmatpush1.msra.mxu0 0.0
    %1690 = vmatprep.subr.mxu0 0.0
    %1691 = vmatpush1.msra.mxu0 0.0
    %1692 = vmatprep.subr.mxu0 0.0
    %1693 = vmatpush1.msra.mxu0 0.0
    %1694 = vmatprep.subr.mxu0 0.0
    %1695 = vmatpush1.msra.mxu0 0.0
    %1696 = vmatprep.subr.mxu0 0.0
    %1697 = vmatpush1.msra.mxu0 0.0
    %1698 = vmatprep.subr.mxu0 0.0
    %1699 = vmatpush1.msra.mxu0 0.0
    %1700 = vmatprep.subr.mxu0 0.0
    %1701 = vmatpush1.msra.mxu0 0.0
    %1702 = vmatprep.subr.mxu0 0.0
    %1703 = vmatpush1.msra.mxu0 0.0
    %1704 = vmatprep.subr.mxu0 0.0
    %1705 = vmatpush1.msra.mxu0 0.0
    %1706 = vmatprep.subr.mxu0 0.0
    %1707 = vmatpush1.msra.mxu0 0.0
    %1708 = vmatprep.mubr.f32.mxu0 0.0
    %1709 = vmatmul.mubr.f32.gmra.mrb[0].mxu0 %v1642
    %v1710 = vpop.f32.mrb[0].mxu0
    %v1711 = vadd.f32 0.0, %v1710
    %v1712 = vpop.f32.mrb[0].mxu0
    %1713 = vdwg.mxu0
    %v1715 = vrot.slane %v1711, 6
    %v1717 = vadd.f32 %v1113, %v1715
    %v1718 = vxor.u32 %v1717, 2147483648
    %v1719 = vmul.f32 %v1718, 1.442695
    %v1720 = vpow.pop %v1719
    %v1721 = vadd.f32 %v1720, 1.0
    %v1722 = vrcp.pop %v1721
    %v1723 = vmul.f32 1.0, %v1722
    %v1724 = vtanh.pop %v1717
    %v1726 = vrot.slane %v1632, 6
    %v1728 = vmul.f32 %v1723, %v1726
    %1730 = vrot.lane.b32.xlu0 %v1724, 32
    %v1731 = vpop.permute.xlu0 %1730
    %v1733 = vmul.f32 %v1723, %v1731
    %1735 = vrot.lane.b32.xlu0 %v1733, 32
    %v1736 = vpop.permute.xlu0 %1735
    %v1738 = vadd.f32 %v1728, %v1736
    %v1739 = vtanh.pop %v1738
    %1741 = vrot.lane.b32.xlu0 %v1739, 32
    %v1742 = vpop.permute.xlu0 %1741
    %v1744 = vmul.f32 %v1723, %v1742
    %v1746 = vrot.slane %v1744, 2
    %1747 = vrot.lane.b32.xlu0 %v1746, 64
    %v1748 = vpop.permute.xlu0 %1747
    %v1749 = vsel %vm169, %v1748, 0
    %1751 = vmatprep.subr.mxu0 0.0
    %1752 = vmatpush1.msra.mxu0 %v1116
    %1753 = vmatprep.subr.mxu0 0.0
    %1754 = vmatpush1.msra.mxu0 %v1117
    %1755 = vmatprep.subr.mxu0 0.0
    %1756 = vmatpush1.msra.mxu0 %v1118
    %1757 = vmatprep.subr.mxu0 0.0
    %1758 = vmatpush1.msra.mxu0 %v1119
    %1759 = vmatprep.subr.mxu0 0.0
    %1760 = vmatpush1.msra.mxu0 0.0
    %1761 = vmatprep.subr.mxu0 0.0
    %1762 = vmatpush1.msra.mxu0 0.0
    %1763 = vmatprep.subr.mxu0 0.0
    %1764 = vmatpush1.msra.mxu0 0.0
    %1765 = vmatprep.subr.mxu0 0.0
    %1766 = vmatpush1.msra.mxu0 0.0
    %1767 = vmatprep.subr.mxu0 0.0
    %1768 = vmatpush1.msra.mxu0 0.0
    %1769 = vmatprep.subr.mxu0 0.0
    %1770 = vmatpush1.msra.mxu0 0.0
    %1771 = vmatprep.subr.mxu0 0.0
    %1772 = vmatpush1.msra.mxu0 0.0
    %1773 = vmatprep.subr.mxu0 0.0
    %1774 = vmatpush1.msra.mxu0 0.0
    %1775 = vmatprep.subr.mxu0 0.0
    %1776 = vmatpush1.msra.mxu0 0.0
    %1777 = vmatprep.subr.mxu0 0.0
    %1778 = vmatpush1.msra.mxu0 0.0
    %1779 = vmatprep.subr.mxu0 0.0
    %1780 = vmatpush1.msra.mxu0 0.0
    %1781 = vmatprep.subr.mxu0 0.0
    %1782 = vmatpush1.msra.mxu0 0.0
    %1783 = vmatprep.subr.mxu0 0.0
    %1784 = vmatpush1.msra.mxu0 0.0
    %1785 = vmatprep.subr.mxu0 0.0
    %1786 = vmatpush1.msra.mxu0 0.0
    %1787 = vmatprep.subr.mxu0 0.0
    %1788 = vmatpush1.msra.mxu0 0.0
    %1789 = vmatprep.subr.mxu0 0.0
    %1790 = vmatpush1.msra.mxu0 0.0
    %1791 = vmatprep.subr.mxu0 0.0
    %1792 = vmatpush1.msra.mxu0 0.0
    %1793 = vmatprep.subr.mxu0 0.0
    %1794 = vmatpush1.msra.mxu0 0.0
    %1795 = vmatprep.subr.mxu0 0.0
    %1796 = vmatpush1.msra.mxu0 0.0
    %1797 = vmatprep.subr.mxu0 0.0
    %1798 = vmatpush1.msra.mxu0 0.0
    %1799 = vmatprep.subr.mxu0 0.0
    %1800 = vmatpush1.msra.mxu0 0.0
    %1801 = vmatprep.subr.mxu0 0.0
    %1802 = vmatpush1.msra.mxu0 0.0
    %1803 = vmatprep.subr.mxu0 0.0
    %1804 = vmatpush1.msra.mxu0 0.0
    %1805 = vmatprep.subr.mxu0 0.0
    %1806 = vmatpush1.msra.mxu0 0.0
    %1807 = vmatprep.subr.mxu0 0.0
    %1808 = vmatpush1.msra.mxu0 0.0
    %1809 = vmatprep.subr.mxu0 0.0
    %1810 = vmatpush1.msra.mxu0 0.0
    %1811 = vmatprep.subr.mxu0 0.0
    %1812 = vmatpush1.msra.mxu0 0.0
    %1813 = vmatprep.subr.mxu0 0.0
    %1814 = vmatpush1.msra.mxu0 0.0
    %1815 = vmatprep.mubr.f32.mxu0 0.0
    %1816 = vmatmul.mubr.f32.gmra.mrb[0].mxu0 %v1749
    %v1817 = vpop.f32.mrb[0].mxu0
    %v1818 = vadd.f32 0.0, %v1817
    %v1819 = vpop.f32.mrb[0].mxu0
    %1820 = vdwg.mxu0
    %v1822 = vrot.slane %v1818, 4
    %v1824 = vadd.f32 %v1113, %v1822
    %v1825 = vxor.u32 %v1824, 2147483648
    %v1826 = vmul.f32 %v1825, 1.442695
    %v1827 = vpow.pop %v1826
    %v1828 = vadd.f32 %v1827, 1.0
    %v1829 = vrcp.pop %v1828
    %v1830 = vmul.f32 1.0, %v1829
    %v1831 = vtanh.pop %v1824
    %v1833 = vrot.slane %v1738, 6
    %v1835 = vmul.f32 %v1830, %v1833
    %1837 = vrot.lane.b32.xlu0 %v1831, 32
    %v1838 = vpop.permute.xlu0 %1837
    %v1840 = vmul.f32 %v1830, %v1838
    %1842 = vrot.lane.b32.xlu0 %v1840, 32
    %v1843 = vpop.permute.xlu0 %1842
    %v1845 = vadd.f32 %v1835, %v1843
    %v1846 = vtanh.pop %v1845
    %1848 = vrot.lane.b32.xlu0 %v1846, 32
    %v1849 = vpop.permute.xlu0 %1848
    %v1851 = vmul.f32 %v1830, %v1849
    %v1853 = vrot.slane %v1851, 4
    %1854 = vrot.lane.b32.xlu0 %v1853, 64
    %v1855 = vpop.permute.xlu0 %1854
    %v1856 = vsel %vm169, %v1855, 0
    %1858 = vmatprep.subr.mxu0 0.0
    %1859 = vmatpush1.msra.mxu0 %v1116
    %1860 = vmatprep.subr.mxu0 0.0
    %1861 = vmatpush1.msra.mxu0 %v1117
    %1862 = vmatprep.subr.mxu0 0.0
    %1863 = vmatpush1.msra.mxu0 %v1118
    %1864 = vmatprep.subr.mxu0 0.0
    %1865 = vmatpush1.msra.mxu0 %v1119
    %1866 = vmatprep.subr.mxu0 0.0
    %1867 = vmatpush1.msra.mxu0 0.0
    %1868 = vmatprep.subr.mxu0 0.0
    %1869 = vmatpush1.msra.mxu0 0.0
    %1870 = vmatprep.subr.mxu0 0.0
    %1871 = vmatpush1.msra.mxu0 0.0
    %1872 = vmatprep.subr.mxu0 0.0
    %1873 = vmatpush1.msra.mxu0 0.0
    %1874 = vmatprep.subr.mxu0 0.0
    %1875 = vmatpush1.msra.mxu0 0.0
    %1876 = vmatprep.subr.mxu0 0.0
    %1877 = vmatpush1.msra.mxu0 0.0
    %1878 = vmatprep.subr.mxu0 0.0
    %1879 = vmatpush1.msra.mxu0 0.0
    %1880 = vmatprep.subr.mxu0 0.0
    %1881 = vmatpush1.msra.mxu0 0.0
    %1882 = vmatprep.subr.mxu0 0.0
    %1883 = vmatpush1.msra.mxu0 0.0
    %1884 = vmatprep.subr.mxu0 0.0
    %1885 = vmatpush1.msra.mxu0 0.0
    %1886 = vmatprep.subr.mxu0 0.0
    %1887 = vmatpush1.msra.mxu0 0.0
    %1888 = vmatprep.subr.mxu0 0.0
    %1889 = vmatpush1.msra.mxu0 0.0
    %1890 = vmatprep.subr.mxu0 0.0
    %1891 = vmatpush1.msra.mxu0 0.0
    %1892 = vmatprep.subr.mxu0 0.0
    %1893 = vmatpush1.msra.mxu0 0.0
    %1894 = vmatprep.subr.mxu0 0.0
    %1895 = vmatpush1.msra.mxu0 0.0
    %1896 = vmatprep.subr.mxu0 0.0
    %1897 = vmatpush1.msra.mxu0 0.0
    %1898 = vmatprep.subr.mxu0 0.0
    %1899 = vmatpush1.msra.mxu0 0.0
    %1900 = vmatprep.subr.mxu0 0.0
    %1901 = vmatpush1.msra.mxu0 0.0
    %1902 = vmatprep.subr.mxu0 0.0
    %1903 = vmatpush1.msra.mxu0 0.0
    %1904 = vmatprep.subr.mxu0 0.0
    %1905 = vmatpush1.msra.mxu0 0.0
    %1906 = vmatprep.subr.mxu0 0.0
    %1907 = vmatpush1.msra.mxu0 0.0
    %1908 = vmatprep.subr.mxu0 0.0
    %1909 = vmatpush1.msra.mxu0 0.0
    %1910 = vmatprep.subr.mxu0 0.0
    %1911 = vmatpush1.msra.mxu0 0.0
    %1912 = vmatprep.subr.mxu0 0.0
    %1913 = vmatpush1.msra.mxu0 0.0
    %1914 = vmatprep.subr.mxu0 0.0
    %1915 = vmatpush1.msra.mxu0 0.0
    %1916 = vmatprep.subr.mxu0 0.0
    %1917 = vmatpush1.msra.mxu0 0.0
    %1918 = vmatprep.subr.mxu0 0.0
    %1919 = vmatpush1.msra.mxu0 0.0
    %1920 = vmatprep.subr.mxu0 0.0
    %1921 = vmatpush1.msra.mxu0 0.0
    %1922 = vmatprep.mubr.f32.mxu0 0.0
    %1923 = vmatmul.mubr.f32.gmra.mrb[0].mxu0 %v1856
    %v1924 = vpop.f32.mrb[0].mxu0
    %v1925 = vadd.f32 0.0, %v1924
    %v1926 = vpop.f32.mrb[0].mxu0
    %1927 = vdwg.mxu0
    %v1929 = vrot.slane %v1925, 2
    %v1931 = vadd.f32 %v1113, %v1929
    %v1932 = vxor.u32 %v1931, 2147483648
    %v1933 = vmul.f32 %v1932, 1.442695
    %v1934 = vpow.pop %v1933
    %v1935 = vadd.f32 %v1934, 1.0
    %v1936 = vrcp.pop %v1935
    %v1937 = vmul.f32 1.0, %v1936
    %v1938 = vtanh.pop %v1931
    %v1940 = vrot.slane %v1845, 6
    %v1942 = vmul.f32 %v1937, %v1940
    %1944 = vrot.lane.b32.xlu0 %v1938, 32
    %v1945 = vpop.permute.xlu0 %1944
    %v1947 = vmul.f32 %v1937, %v1945
    %1949 = vrot.lane.b32.xlu0 %v1947, 32
    %v1950 = vpop.permute.xlu0 %1949
    %v1952 = vadd.f32 %v1942, %v1950
    %v1953 = vtanh.pop %v1952
    %1955 = vrot.lane.b32.xlu0 %v1953, 32
    %v1956 = vpop.permute.xlu0 %1955
    %v1958 = vmul.f32 %v1937, %v1956
    %v1959 = vrot.slane %v1214, 1
    %v1962 = vrot.slane %v1427, 3
    %v1964 = vrot.slane %v1534, 4
    %v1966 = vrot.slane %v1638, 5
    %v1968 = vrot.slane %v1744, 6
    %v1970 = vrot.slane %v1851, 7
    %vm1972 = vcmask 1040384
    %v1973 = vsel %vm1972, %v1959, %v1322
    %v1974 = vsel %vm1012, %v1973, %v1962
    %vm1975 = vcmask 1042432
    %v1976 = vsel %vm1975, %v1974, %v1964
    %v1977 = vsel %vm86, %v1976, %v1966
    %vm1978 = vcmask 1044480
    %v1979 = vsel %vm1978, %v1977, %v1968
    %v1980 = vsel %vm1015, %v1979, %v1970
    %vm1981 = vcmask 1046528
    %v1982 = vsel %vm1981, %v1980, %v1958
    %v1983 = vld [vmem:[%s7] sm:$0xff]
    %v1984 = vld [vmem:[%s7 + $0x8] sm:$0xff]
    %v1985 = vld [vmem:[%s7 + $0x10] sm:$0xff]
    %v1986 = vld [vmem:[%s7 + $0x18] sm:$0xff]
    %v1987 = vld [vmem:[#allocation6] sm:$0x1]
    %v1989 = vlaneseq
    %v1990 = vshrl.u32 %v1989, 7
    %v1991 = vsub.s32 0, %v1990
    %v1992 = vrot.slane %v1987, %v1991
    %1995 = vrot.lane.b32.xlu0 %v1982, 64
    %v1996 = vpop.permute.xlu0 %1995
    %v1997 = vsel %vm169, %v1996, 0
    %1999 = vmatprep.subr.mxu0 0.0
    %2000 = vmatpush1.msra.mxu0 %v1983
    %2001 = vmatprep.subr.mxu0 0.0
    %2002 = vmatpush1.msra.mxu0 %v1984
    %2003 = vmatprep.subr.mxu0 0.0
    %2004 = vmatpush1.msra.mxu0 %v1985
    %2005 = vmatprep.subr.mxu0 0.0
    %2006 = vmatpush1.msra.mxu0 %v1986
    %2007 = vmatprep.subr.mxu0 0.0
    %2008 = vmatpush1.msra.mxu0 0.0
    %2009 = vmatprep.subr.mxu0 0.0
    %2010 = vmatpush1.msra.mxu0 0.0
    %2011 = vmatprep.subr.mxu0 0.0
    %2012 = vmatpush1.msra.mxu0 0.0
    %2013 = vmatprep.subr.mxu0 0.0
    %2014 = vmatpush1.msra.mxu0 0.0
    %2015 = vmatprep.subr.mxu0 0.0
    %2016 = vmatpush1.msra.mxu0 0.0
    %2017 = vmatprep.subr.mxu0 0.0
    %2018 = vmatpush1.msra.mxu0 0.0
    %2019 = vmatprep.subr.mxu0 0.0
    %2020 = vmatpush1.msra.mxu0 0.0
    %2021 = vmatprep.subr.mxu0 0.0
    %2022 = vmatpush1.msra.mxu0 0.0
    %2023 = vmatprep.subr.mxu0 0.0
    %2024 = vmatpush1.msra.mxu0 0.0
    %2025 = vmatprep.subr.mxu0 0.0
    %2026 = vmatpush1.msra.mxu0 0.0
    %2027 = vmatprep.subr.mxu0 0.0
    %2028 = vmatpush1.msra.mxu0 0.0
    %2029 = vmatprep.subr.mxu0 0.0
    %2030 = vmatpush1.msra.mxu0 0.0
    %2031 = vmatprep.subr.mxu0 0.0
    %2032 = vmatpush1.msra.mxu0 0.0
    %2033 = vmatprep.subr.mxu0 0.0
    %2034 = vmatpush1.msra.mxu0 0.0
    %2035 = vmatprep.subr.mxu0 0.0
    %2036 = vmatpush1.msra.mxu0 0.0
    %2037 = vmatprep.subr.mxu0 0.0
    %2038 = vmatpush1.msra.mxu0 0.0
    %2039 = vmatprep.subr.mxu0 0.0
    %2040 = vmatpush1.msra.mxu0 0.0
    %2041 = vmatprep.subr.mxu0 0.0
    %2042 = vmatpush1.msra.mxu0 0.0
    %2043 = vmatprep.subr.mxu0 0.0
    %2044 = vmatpush1.msra.mxu0 0.0
    %2045 = vmatprep.subr.mxu0 0.0
    %2046 = vmatpush1.msra.mxu0 0.0
    %2047 = vmatprep.subr.mxu0 0.0
    %2048 = vmatpush1.msra.mxu0 0.0
    %2049 = vmatprep.subr.mxu0 0.0
    %2050 = vmatpush1.msra.mxu0 0.0
    %2051 = vmatprep.subr.mxu0 0.0
    %2052 = vmatpush1.msra.mxu0 0.0
    %2053 = vmatprep.subr.mxu0 0.0
    %2054 = vmatpush1.msra.mxu0 0.0
    %2055 = vmatprep.subr.mxu0 0.0
    %2056 = vmatpush1.msra.mxu0 0.0
    %2057 = vmatprep.subr.mxu0 0.0
    %2058 = vmatpush1.msra.mxu0 0.0
    %2059 = vmatprep.subr.mxu0 0.0
    %2060 = vmatpush1.msra.mxu0 0.0
    %2061 = vmatprep.subr.mxu0 0.0
    %2062 = vmatpush1.msra.mxu0 0.0
    %2063 = vmatprep.mubr.f32.mxu0 0.0
    %2064 = vmatmul.mubr.f32.gmra.mrb[0].mxu0 %v1997
    %v2065 = vpop.f32.mrb[0].mxu0
    %v2066 = vadd.f32 %v1992, %v2065
    %v2067 = vpop.f32.mrb[0].mxu0
    %2068 = vdwg.mxu0
    %vm2069 = vcmask 23552
    %2070 = vst.msk [vmem:[%s9] sm:$0xff] %vm2069, %v2066
    // Predicated region
    $region50: #{mlstm_basic_forward.1} parent=1 // pred_check
      _
    $region51: #{mlstm_basic_forward.1} parent=1 // pred_check_branch
      %2072 = sbr.rel (0) target = $region53
    $region52: #{mlstm_basic_forward.1} parent=1 // pred_region
      _
    $region53: #{mlstm_basic_forward.1} parent=1 // pred_fallthru
      _
    // Predicated region
    $region54: #{mlstm_basic_forward.1} parent=1 // pred_check
      _
    $region55: #{mlstm_basic_forward.1} parent=1 // pred_check_branch
      %2074 = sbr.rel (0) target = $region57
    $region56: #{mlstm_basic_forward.1} parent=1 // pred_region
      _
    $region57: #{mlstm_basic_forward.1} parent=1 // pred_fallthru
      _
    %2075 = vsyncpa [#allocation3], 1
    %2076 = vsyncpa [#allocation5], 1

</llo_original>
